<compile_context>
chip_gen: v5e
topology: v5e:2x2
jax: 0.10.0
libtpu: 0.0.40
codegen_flags: <defaults>
</compile_context>

<pallas_src>
import jax
import jax.numpy as jnp
from jax import lax
from jax.experimental import pallas as pl
from jax.experimental.pallas import tpu as pltpu


# ---------------------------------------------------------------------------
# Pallas kernel
# ---------------------------------------------------------------------------
def _make_wn_kernel(hidden, kernel_size, dilation_rate, n_resblocks, seq_len,
                    spk_dim, pad, padded_len):
    H, K, R, L, S, P, Lp = (hidden, kernel_size, n_resblocks, seq_len,
                            spk_dim, pad, padded_len)
    c = (K - 1) // 2  # center tap

    def kernel(x_ref, mask_ref, spk_ref, w_in_ref, b_in_ref, w_rs_ref, b_rs_ref,
               out_ref, xp_ref):
        mask = mask_ref[0].astype(jnp.float32)      # (1, L)  broadcast over channels
        spk_bf = spk_ref[0].astype(jnp.bfloat16)    # (S, L)
        x_cur = x_ref[0].astype(jnp.float32)        # (H, L)  residual stream (f32)

        # Zero-padded residual scratch: halo columns stay zero across all blocks
        # (this is exactly the conv zero-padding, even when the dilated offset
        # reaches or exceeds L).
        xp_ref[...] = jnp.zeros((H, Lp), jnp.bfloat16)

        out = None
        for i in range(R):
            d = dilation_rate ** i

            # Write the current residual (bf16) into the center of the padded
            # scratch; taps are then plain static lane-offset slices.
            x_bf = x_cur.astype(jnp.bfloat16)
            xp_ref[:, P:P + L] = x_bf

            pieces = []
            for k in range(K):
                if k == c:
                    pieces.append(x_bf)                       # center tap, no shift
                else:
                    s0 = P + (k - c) * d                      # static per-tap offset
                    pieces.append(xp_ref[:, s0:s0 + L])
            pieces.append(spk_bf)                             # fold conditioning in
            operand = jnp.concatenate(pieces, axis=0)         # (K*H + S, L) bf16

            # Fused dilated-conv + conditioning matmul (bf16 in, f32 accumulate).
            a = jnp.dot(w_in_ref[i], operand,
                        preferred_element_type=jnp.float32)   # (2H, L) f32
            a = a + b_in_ref[i]                               # (2H, 1) broadcast

            # Gated activation unit (kept in f32; channel split is sublane-aligned).
            acts = jnp.tanh(a[:H, :]) * jax.nn.sigmoid(a[H:, :])   # (H, L) f32
            acts_bf = acts.astype(jnp.bfloat16)

            w_rs_i = w_rs_ref[i]                              # (2H, H) bf16
            b_rs_i = b_rs_ref[i]                              # (2H, 1) f32
            if i < R - 1:
                rs = jnp.dot(w_rs_i, acts_bf,
                             preferred_element_type=jnp.float32) + b_rs_i
                x_cur = (x_cur + rs[:H, :]) * mask            # residual update
                skip = rs[H:, :]
            else:
                # Last block: only the skip half exists (stored in rows [H:2H]).
                skip = jnp.dot(w_rs_i[H:, :], acts_bf,
                               preferred_element_type=jnp.float32) + b_rs_i[H:, :]
            out = skip if out is None else out + skip

        out_ref[0] = (out * mask).astype(out_ref.dtype)

    return kernel


# ---------------------------------------------------------------------------
# Wrapper (weight stacking / bf16 casting + pallas_call plumbing; no activation
# transposes -- NCL layout is kept end to end)
# ---------------------------------------------------------------------------
def wn_forward_pallas(x, x_mask, speaker_emb, params, *, hidden, kernel_size,
                      dilation_rate, n_resblocks):
    B, H, L = x.shape
    assert H == hidden
    S = speaker_emb.shape[1]
    R, K = n_resblocks, kernel_size
    c = (K - 1) // 2
    d_max = dilation_rate ** (R - 1)
    halo = c * d_max
    P = ((halo + 127) // 128) * 128 if halo > 0 else 0   # lane-tile aligned halo
    Lp = L + 2 * P
    D = K * H + S                                        # fused contraction depth

    cond_full = params["cond_w"][:, :, 0]                # (2HR, S)

    w_in_list, b_in_list, w_rs_list, b_rs_list = [], [], [], []
    for i in range(R):
        in_w = params["in_w"][i]                         # (2H, H, K)
        # columns grouped by tap k: [o, k*H + h] = in_w[o, h, k]
        w_taps = jnp.transpose(in_w, (0, 2, 1)).reshape(2 * H, K * H)
        cond_i = cond_full[i * 2 * H:(i + 1) * 2 * H, :]  # (2H, S)
        w_in_list.append(jnp.concatenate([w_taps, cond_i], axis=1))   # (2H, D)
        b_in_list.append(params["in_b"][i].reshape(2 * H, 1))

        rs_w = params["rs_w"][i][:, :, 0]                # (O, H)
        rs_b = params["rs_b"][i]                         # (O,)
        if i < R - 1:                                    # O == 2H
            w_rs_list.append(rs_w)
            b_rs_list.append(rs_b.reshape(2 * H, 1))
        else:                                            # O == H -> pad into skip half
            w_rs_list.append(
                jnp.concatenate([jnp.zeros((H, H), rs_w.dtype), rs_w], axis=0))
            b_rs_list.append(
                jnp.concatenate([jnp.zeros((H,), rs_b.dtype), rs_b]).reshape(2 * H, 1))

    w_in = jnp.stack(w_in_list).astype(jnp.bfloat16)     # (R, 2H, D)
    b_in = jnp.stack(b_in_list).astype(jnp.float32)      # (R, 2H, 1)
    w_rs = jnp.stack(w_rs_list).astype(jnp.bfloat16)     # (R, 2H, H)
    b_rs = jnp.stack(b_rs_list).astype(jnp.float32)      # (R, 2H, 1)

    kernel = _make_wn_kernel(H, K, dilation_rate, R, L, S, P, Lp)

    grid_spec = pltpu.PrefetchScalarGridSpec(
        num_scalar_prefetch=0,
        grid=(B,),
        in_specs=[
            pl.BlockSpec((1, H, L), lambda b: (b, 0, 0)),       # x
            pl.BlockSpec((1, 1, L), lambda b: (b, 0, 0)),       # mask
            pl.BlockSpec((1, S, L), lambda b: (b, 0, 0)),       # speaker emb
            pl.BlockSpec((R, 2 * H, D), lambda b: (0, 0, 0)),   # fused conv+cond W
            pl.BlockSpec((R, 2 * H, 1), lambda b: (0, 0, 0)),   # conv bias
            pl.BlockSpec((R, 2 * H, H), lambda b: (0, 0, 0)),   # res/skip W
            pl.BlockSpec((R, 2 * H, 1), lambda b: (0, 0, 0)),   # res/skip bias
        ],
        out_specs=pl.BlockSpec((1, H, L), lambda b: (b, 0, 0)),
        scratch_shapes=[pltpu.VMEM((H, Lp), jnp.bfloat16)],
    )

    out = pl.pallas_call(
        kernel,
        out_shape=jax.ShapeDtypeStruct((B, H, L), x.dtype),
        grid_spec=grid_spec,
        compiler_params=pltpu.CompilerParams(
            dimension_semantics=("parallel",),      # one batch per TensorCore
            vmem_limit_bytes=48 * 1024 * 1024),     # safe for v7x's 64 MiB VMEM
    )(x, x_mask, speaker_emb, w_in, b_in, w_rs, b_rs)
    return out


# ---------------------------------------------------------------------------
# Pure-JAX reference (f32, for correctness cross-check)
# ---------------------------------------------------------------------------
def _conv1d(x, w, b, dilation, padding):
    y = lax.conv_general_dilated(
        x, w, window_strides=(1,), padding=[(padding, padding)],
        rhs_dilation=(dilation,), dimension_numbers=("NCH", "OIH", "NCH"))
    if b is not None:
        y = y + b[None, :, None]
    return y


def wn_forward_ref(x, x_mask, speaker_emb, params, *, hidden, kernel_size,
                   dilation_rate, n_resblocks):
    H = hidden
    fmap = _conv1d(speaker_emb, params["cond_w"], None, 1, 0)
    output = jnp.zeros_like(x)
    for i in range(n_resblocks):
        d = dilation_rate ** i
        pad = (kernel_size * d - d) // 2
        x_in = _conv1d(x, params["in_w"][i], params["in_b"][i], d, pad)
        a = x_in + fmap[:, i * 2 * H:(i + 1) * 2 * H, :]
        acts = jnp.tanh(a[:, :H, :]) * jax.nn.sigmoid(a[:, H:, :])
        rs = _conv1d(acts, params["rs_w"][i], params["rs_b"][i], 1, 0)
        if i < n_resblocks - 1:
            x = (x + rs[:, :H, :]) * x_mask
            output = output + rs[:, H:, :]
        else:
            output = output + rs
    return output * x_mask


# ---------------------------------------------------------------------------
# Deterministic synthetic parameters (weight-norm reparametrized, as in PyTorch)
# ---------------------------------------------------------------------------
def _weight_norm(v, g):
    # nn.utils.weight_norm with dim=0: w = g * v / ||v|| (norm over all dims != 0)
    norm = jnp.sqrt(jnp.sum(v * v, axis=tuple(range(1, v.ndim)), keepdims=True))
    return g * v / norm


def init_params(key, hidden, kernel_size, dilation_rate, n_resblocks, spk_dim):
    H, K, R, S = hidden, kernel_size, n_resblocks, spk_dim
    keys = jax.random.split(key, 2 + R)
    params = {"in_w": [], "in_b": [], "rs_w": [], "rs_b": []}
    cond_v = jax.random.normal(keys[0], (2 * H * R, S, 1), jnp.float32) * 0.1
    cond_g = jax.random.uniform(keys[1], (2 * H * R, 1, 1), jnp.float32, 0.5, 1.5)
    params["cond_w"] = _weight_norm(cond_v, cond_g)  # condition layer has no bias
    for i in range(R):
        k0, k1, k2, k3, k4, k5 = jax.random.split(keys[2 + i], 6)
        in_v = jax.random.normal(k0, (2 * H, H, K), jnp.float32) * 0.1
        in_g = jax.random.uniform(k1, (2 * H, 1, 1), jnp.float32, 0.5, 1.5)
        params["in_w"].append(_weight_norm(in_v, in_g))
        params["in_b"].append(jax.random.normal(k2, (2 * H,), jnp.float32) * 0.1)
        O = 2 * H if i < R - 1 else H
        rs_v = jax.random.normal(k3, (O, H, 1), jnp.float32) * 0.1
        rs_g = jax.random.uniform(k4, (O, 1, 1), jnp.float32, 0.5, 1.5)
        params["rs_w"].append(_weight_norm(rs_v, rs_g))
        params["rs_b"].append(jax.random.normal(k5, (O,), jnp.float32) * 0.1)
    return params


# ---------------------------------------------------------------------------
if __name__ == "__main__":
    H, K, DR, R, S = 32, 3, 2, 3, 16   # hidden, kernel, dilation_rate, resblocks, spk dim
    B, L = 2, 64

    key = jax.random.PRNGKey(0)
    kx, ks, kp = jax.random.split(key, 3)
    x = jax.random.normal(kx, (B, H, L), jnp.float32)
    # mask: variable-length sequences, (B, 1, L) as in typical WN usage
    lens = jnp.array([L, L - 16])
    x_mask = (jnp.arange(L)[None, :] < lens[:, None]).astype(jnp.float32)[:, None, :]
    speaker_emb = jax.random.normal(ks, (B, S, L), jnp.float32)
    params = init_params(kp, H, K, DR, R, S)

    out = wn_forward_pallas(x, x_mask, speaker_emb, params, hidden=H,
                            kernel_size=K, dilation_rate=DR, n_resblocks=R)
    out = jax.block_until_ready(out)

    ref = wn_forward_ref(x, x_mask, speaker_emb, params, hidden=H,
                         kernel_size=K, dilation_rate=DR, n_resblocks=R)
    assert out.shape == ref.shape == (B, H, L)
    # Tolerance loosened vs f32 reference: the kernel feeds bf16 operands to the
    # MXU (f32 accumulation / gating / residual stream preserved).
    if not jnp.allclose(out, ref, rtol=5e-2, atol=5e-2):
        raise AssertionError(
            f"Pallas/ref mismatch, max abs err = {float(jnp.max(jnp.abs(out - ref)))}")
    print("KERNEL_OK")
</pallas_src>

<mosaic_0001>
module attributes {stable_mosaic.version = 11 : i64} {
  func.func @kernel(%arg0: i32, %arg1: memref<1x32x64xf32, #tpu.memory_space<vmem>>, %arg2: memref<1x1x64xf32, #tpu.memory_space<vmem>>, %arg3: memref<1x16x64xf32, #tpu.memory_space<vmem>>, %arg4: memref<3x64x112xbf16, #tpu.memory_space<vmem>>, %arg5: memref<3x64x1xf32, #tpu.memory_space<vmem>>, %arg6: memref<3x64x32xbf16, #tpu.memory_space<vmem>>, %arg7: memref<3x64x1xf32, #tpu.memory_space<vmem>>, %arg8: memref<1x32x64xf32, #tpu.memory_space<vmem>>, %arg9: memref<32x320xbf16, #tpu.memory_space<vmem>>) attributes {dimension_semantics = [#tpu.dimension_semantics<parallel>], iteration_bounds = array<i64: 2>, scalar_prefetch = 0 : i64, scratch_operands = 1 : i64, tpu.core_type = #tpu.core_type<tc>, window_params = [{transform_indices = @transform_0, window_bounds = array<i64: 1, 32, 64>}, {transform_indices = @transform_1, window_bounds = array<i64: 1, 1, 64>}, {transform_indices = @transform_2, window_bounds = array<i64: 1, 16, 64>}, {pipeline_mode = #tpu.pipeline_mode<synchronous>, transform_indices = @transform_3, window_bounds = array<i64: 3, 64, 112>}, {pipeline_mode = #tpu.pipeline_mode<synchronous>, transform_indices = @transform_4, window_bounds = array<i64: 3, 64, 1>}, {pipeline_mode = #tpu.pipeline_mode<synchronous>, transform_indices = @transform_5, window_bounds = array<i64: 3, 64, 32>}, {pipeline_mode = #tpu.pipeline_mode<synchronous>, transform_indices = @transform_6, window_bounds = array<i64: 3, 64, 1>}, {transform_indices = @transform_7, window_bounds = array<i64: 1, 32, 64>}]} {
    %c0 = arith.constant 0 : index
    %c0_0 = arith.constant 0 : index
    %c0_1 = arith.constant 0 : index
    %0 = vector.load %arg2[%c0, %c0_0, %c0_1] : memref<1x1x64xf32, #tpu.memory_space<vmem>>, vector<1x1x64xf32>
    %1 = vector.shape_cast %0 : vector<1x1x64xf32> to vector<1x64xf32>
    %c0_2 = arith.constant 0 : index
    %c0_3 = arith.constant 0 : index
    %c0_4 = arith.constant 0 : index
    %2 = vector.load %arg3[%c0_2, %c0_3, %c0_4] : memref<1x16x64xf32, #tpu.memory_space<vmem>>, vector<1x16x64xf32>
    %3 = vector.shape_cast %2 : vector<1x16x64xf32> to vector<16x64xf32>
    %4 = arith.truncf %3 : vector<16x64xf32> to vector<16x64xbf16>
    %c0_5 = arith.constant 0 : index
    %c0_6 = arith.constant 0 : index
    %c0_7 = arith.constant 0 : index
    %5 = vector.load %arg1[%c0_5, %c0_6, %c0_7] : memref<1x32x64xf32, #tpu.memory_space<vmem>>, vector<1x32x64xf32>
    %6 = vector.shape_cast %5 : vector<1x32x64xf32> to vector<32x64xf32>
    %cst = arith.constant 0.000000e+00 : bf16
    %7 = vector.broadcast %cst : bf16 to vector<32x320xbf16>
    %c0_8 = arith.constant 0 : index
    %c0_9 = arith.constant 0 : index
    %8 = vector.load %arg9[%c0_8, %c0_9] : memref<32x320xbf16, #tpu.memory_space<vmem>>, vector<32x320xbf16>
    tpu.vector_store %arg9[%c0_8, %c0_9], %7 {strides = array<i32>} : memref<32x320xbf16, #tpu.memory_space<vmem>>, vector<32x320xbf16>,
    %9 = arith.truncf %6 : vector<32x64xf32> to vector<32x64xbf16>
    %c0_10 = arith.constant 0 : index
    %c128 = arith.constant 128 : index
    %10 = vector.load %arg9[%c0_10, %c128] : memref<32x320xbf16, #tpu.memory_space<vmem>>, vector<32x64xbf16>
    tpu.vector_store %arg9[%c0_10, %c128], %9 {strides = array<i32>} : memref<32x320xbf16, #tpu.memory_space<vmem>>, vector<32x64xbf16>,
    %c0_11 = arith.constant 0 : index
    %c127 = arith.constant 127 : index
    %11 = vector.load %arg9[%c0_11, %c127] : memref<32x320xbf16, #tpu.memory_space<vmem>>, vector<32x64xbf16>
    %c0_12 = arith.constant 0 : index
    %c129 = arith.constant 129 : index
    %12 = vector.load %arg9[%c0_12, %c129] : memref<32x320xbf16, #tpu.memory_space<vmem>>, vector<32x64xbf16>
    %13 = tpu.concatenate %11, %9, %12, %4 in 0 : vector<32x64xbf16>, vector<32x64xbf16>, vector<32x64xbf16>, vector<16x64xbf16> -> vector<112x64xbf16>
    %c0_13 = arith.constant 0 : index
    %c0_14 = arith.constant 0 : index
    %c0_15 = arith.constant 0 : index
    %14 = vector.load %arg4[%c0_13, %c0_14, %c0_15] : memref<3x64x112xbf16, #tpu.memory_space<vmem>>, vector<1x64x112xbf16>
    %15 = vector.shape_cast %14 : vector<1x64x112xbf16> to vector<64x112xbf16>
    %cst_16 = arith.constant dense<0.000000e+00> : vector<64x64xf32>
    %16 = tpu.matmul %15, %13, %cst_16 {dimension_numbers = #tpu.dot_dimension_numbers<[1], [0], [0], [1], [0, 0, 1, 1], [], []>} : vector<64x112xbf16>, vector<112x64xbf16>, vector<64x64xf32> -> vector<64x64xf32>
    %c0_17 = arith.constant 0 : index
    %c0_18 = arith.constant 0 : index
    %c0_19 = arith.constant 0 : index
    %17 = vector.load %arg5[%c0_17, %c0_18, %c0_19] : memref<3x64x1xf32, #tpu.memory_space<vmem>>, vector<1x64x1xf32>
    %18 = vector.shape_cast %17 : vector<1x64x1xf32> to vector<64x1xf32>
    %19 = vector.broadcast %18 : vector<64x1xf32> to vector<64x64xf32>
    %20 = arith.addf %16, %19 : vector<64x64xf32>
    %21 = vector.extract_strided_slice %20 {offsets = [0, 0], sizes = [32, 64], strides = [1, 1]} : vector<64x64xf32> to vector<32x64xf32>
    %22 = math.tanh %21 : vector<32x64xf32>
    %23 = vector.extract_strided_slice %20 {offsets = [32, 0], sizes = [32, 64], strides = [1, 1]} : vector<64x64xf32> to vector<32x64xf32>
    %24 = arith.negf %23 : vector<32x64xf32>
    %25 = math.exp %24 : vector<32x64xf32>
    %cst_20 = arith.constant 1.000000e+00 : f32
    %26 = vector.broadcast %cst_20 : f32 to vector<32x64xf32>
    %27 = arith.addf %26, %25 : vector<32x64xf32>
    %28 = arith.divf %26, %27 : vector<32x64xf32>
    %29 = arith.mulf %22, %28 : vector<32x64xf32>
    %30 = arith.truncf %29 : vector<32x64xf32> to vector<32x64xbf16>
    %c0_21 = arith.constant 0 : index
    %c0_22 = arith.constant 0 : index
    %c0_23 = arith.constant 0 : index
    %31 = vector.load %arg6[%c0_21, %c0_22, %c0_23] : memref<3x64x32xbf16, #tpu.memory_space<vmem>>, vector<1x64x32xbf16>
    %32 = vector.shape_cast %31 : vector<1x64x32xbf16> to vector<64x32xbf16>
    %c0_24 = arith.constant 0 : index
    %c0_25 = arith.constant 0 : index
    %c0_26 = arith.constant 0 : index
    %33 = vector.load %arg7[%c0_24, %c0_25, %c0_26] : memref<3x64x1xf32, #tpu.memory_space<vmem>>, vector<1x64x1xf32>
    %34 = vector.shape_cast %33 : vector<1x64x1xf32> to vector<64x1xf32>
    %cst_27 = arith.constant dense<0.000000e+00> : vector<64x64xf32>
    %35 = tpu.matmul %32, %30, %cst_27 {dimension_numbers = #tpu.dot_dimension_numbers<[1], [0], [0], [1], [0, 0, 1, 1], [], []>} : vector<64x32xbf16>, vector<32x64xbf16>, vector<64x64xf32> -> vector<64x64xf32>
    %36 = vector.broadcast %34 : vector<64x1xf32> to vector<64x64xf32>
    %37 = arith.addf %35, %36 : vector<64x64xf32>
    %38 = vector.extract_strided_slice %37 {offsets = [0, 0], sizes = [32, 64], strides = [1, 1]} : vector<64x64xf32> to vector<32x64xf32>
    %39 = arith.addf %6, %38 : vector<32x64xf32>
    %40 = vector.broadcast %1 : vector<1x64xf32> to vector<32x64xf32>
    %41 = arith.mulf %39, %40 : vector<32x64xf32>
    %42 = vector.extract_strided_slice %37 {offsets = [32, 0], sizes = [32, 64], strides = [1, 1]} : vector<64x64xf32> to vector<32x64xf32>
    %43 = arith.truncf %41 : vector<32x64xf32> to vector<32x64xbf16>
    %c0_28 = arith.constant 0 : index
    %c128_29 = arith.constant 128 : index
    %44 = vector.load %arg9[%c0_28, %c128_29] : memref<32x320xbf16, #tpu.memory_space<vmem>>, vector<32x64xbf16>
    tpu.vector_store %arg9[%c0_28, %c128_29], %43 {strides = array<i32>} : memref<32x320xbf16, #tpu.memory_space<vmem>>, vector<32x64xbf16>,
    %c0_30 = arith.constant 0 : index
    %c126 = arith.constant 126 : index
    %45 = vector.load %arg9[%c0_30, %c126] : memref<32x320xbf16, #tpu.memory_space<vmem>>, vector<32x64xbf16>
    %c0_31 = arith.constant 0 : index
    %c130 = arith.constant 130 : index
    %46 = vector.load %arg9[%c0_31, %c130] : memref<32x320xbf16, #tpu.memory_space<vmem>>, vector<32x64xbf16>
    %47 = tpu.concatenate %45, %43, %46, %4 in 0 : vector<32x64xbf16>, vector<32x64xbf16>, vector<32x64xbf16>, vector<16x64xbf16> -> vector<112x64xbf16>
    %c1 = arith.constant 1 : index
    %c0_32 = arith.constant 0 : index
    %c0_33 = arith.constant 0 : index
    %48 = vector.load %arg4[%c1, %c0_32, %c0_33] : memref<3x64x112xbf16, #tpu.memory_space<vmem>>, vector<1x64x112xbf16>
    %49 = vector.shape_cast %48 : vector<1x64x112xbf16> to vector<64x112xbf16>
    %cst_34 = arith.constant dense<0.000000e+00> : vector<64x64xf32>
    %50 = tpu.matmul %49, %47, %cst_34 {dimension_numbers = #tpu.dot_dimension_numbers<[1], [0], [0], [1], [0, 0, 1, 1], [], []>} : vector<64x112xbf16>, vector<112x64xbf16>, vector<64x64xf32> -> vector<64x64xf32>
    %c1_35 = arith.constant 1 : index
    %c0_36 = arith.constant 0 : index
    %c0_37 = arith.constant 0 : index
    %51 = vector.load %arg5[%c1_35, %c0_36, %c0_37] : memref<3x64x1xf32, #tpu.memory_space<vmem>>, vector<1x64x1xf32>
    %52 = vector.shape_cast %51 : vector<1x64x1xf32> to vector<64x1xf32>
    %53 = vector.broadcast %52 : vector<64x1xf32> to vector<64x64xf32>
    %54 = arith.addf %50, %53 : vector<64x64xf32>
    %55 = vector.extract_strided_slice %54 {offsets = [0, 0], sizes = [32, 64], strides = [1, 1]} : vector<64x64xf32> to vector<32x64xf32>
    %56 = math.tanh %55 : vector<32x64xf32>
    %57 = vector.extract_strided_slice %54 {offsets = [32, 0], sizes = [32, 64], strides = [1, 1]} : vector<64x64xf32> to vector<32x64xf32>
    %58 = arith.negf %57 : vector<32x64xf32>
    %59 = math.exp %58 : vector<32x64xf32>
    %cst_38 = arith.constant 1.000000e+00 : f32
    %60 = vector.broadcast %cst_38 : f32 to vector<32x64xf32>
    %61 = arith.addf %60, %59 : vector<32x64xf32>
    %62 = arith.divf %60, %61 : vector<32x64xf32>
    %63 = arith.mulf %56, %62 : vector<32x64xf32>
    %64 = arith.truncf %63 : vector<32x64xf32> to vector<32x64xbf16>
    %c1_39 = arith.constant 1 : index
    %c0_40 = arith.constant 0 : index
    %c0_41 = arith.constant 0 : index
    %65 = vector.load %arg6[%c1_39, %c0_40, %c0_41] : memref<3x64x32xbf16, #tpu.memory_space<vmem>>, vector<1x64x32xbf16>
    %66 = vector.shape_cast %65 : vector<1x64x32xbf16> to vector<64x32xbf16>
    %c1_42 = arith.constant 1 : index
    %c0_43 = arith.constant 0 : index
    %c0_44 = arith.constant 0 : index
    %67 = vector.load %arg7[%c1_42, %c0_43, %c0_44] : memref<3x64x1xf32, #tpu.memory_space<vmem>>, vector<1x64x1xf32>
    %68 = vector.shape_cast %67 : vector<1x64x1xf32> to vector<64x1xf32>
    %cst_45 = arith.constant dense<0.000000e+00> : vector<64x64xf32>
    %69 = tpu.matmul %66, %64, %cst_45 {dimension_numbers = #tpu.dot_dimension_numbers<[1], [0], [0], [1], [0, 0, 1, 1], [], []>} : vector<64x32xbf16>, vector<32x64xbf16>, vector<64x64xf32> -> vector<64x64xf32>
    %70 = vector.broadcast %68 : vector<64x1xf32> to vector<64x64xf32>
    %71 = arith.addf %69, %70 : vector<64x64xf32>
    %72 = vector.extract_strided_slice %71 {offsets = [0, 0], sizes = [32, 64], strides = [1, 1]} : vector<64x64xf32> to vector<32x64xf32>
    %73 = arith.addf %41, %72 : vector<32x64xf32>
    %74 = vector.broadcast %1 : vector<1x64xf32> to vector<32x64xf32>
    %75 = arith.mulf %73, %74 : vector<32x64xf32>
    %76 = vector.extract_strided_slice %71 {offsets = [32, 0], sizes = [32, 64], strides = [1, 1]} : vector<64x64xf32> to vector<32x64xf32>
    %77 = arith.addf %42, %76 : vector<32x64xf32>
    %78 = arith.truncf %75 : vector<32x64xf32> to vector<32x64xbf16>
    %c0_46 = arith.constant 0 : index
    %c128_47 = arith.constant 128 : index
    %79 = vector.load %arg9[%c0_46, %c128_47] : memref<32x320xbf16, #tpu.memory_space<vmem>>, vector<32x64xbf16>
    tpu.vector_store %arg9[%c0_46, %c128_47], %78 {strides = array<i32>} : memref<32x320xbf16, #tpu.memory_space<vmem>>, vector<32x64xbf16>,
    %c0_48 = arith.constant 0 : index
    %c124 = arith.constant 124 : index
    %80 = vector.load %arg9[%c0_48, %c124] : memref<32x320xbf16, #tpu.memory_space<vmem>>, vector<32x64xbf16>
    %c0_49 = arith.constant 0 : index
    %c132 = arith.constant 132 : index
    %81 = vector.load %arg9[%c0_49, %c132] : memref<32x320xbf16, #tpu.memory_space<vmem>>, vector<32x64xbf16>
    %82 = tpu.concatenate %80, %78, %81, %4 in 0 : vector<32x64xbf16>, vector<32x64xbf16>, vector<32x64xbf16>, vector<16x64xbf16> -> vector<112x64xbf16>
    %c2 = arith.constant 2 : index
    %c0_50 = arith.constant 0 : index
    %c0_51 = arith.constant 0 : index
    %83 = vector.load %arg4[%c2, %c0_50, %c0_51] : memref<3x64x112xbf16, #tpu.memory_space<vmem>>, vector<1x64x112xbf16>
    %84 = vector.shape_cast %83 : vector<1x64x112xbf16> to vector<64x112xbf16>
    %cst_52 = arith.constant dense<0.000000e+00> : vector<64x64xf32>
    %85 = tpu.matmul %84, %82, %cst_52 {dimension_numbers = #tpu.dot_dimension_numbers<[1], [0], [0], [1], [0, 0, 1, 1], [], []>} : vector<64x112xbf16>, vector<112x64xbf16>, vector<64x64xf32> -> vector<64x64xf32>
    %c2_53 = arith.constant 2 : index
    %c0_54 = arith.constant 0 : index
    %c0_55 = arith.constant 0 : index
    %86 = vector.load %arg5[%c2_53, %c0_54, %c0_55] : memref<3x64x1xf32, #tpu.memory_space<vmem>>, vector<1x64x1xf32>
    %87 = vector.shape_cast %86 : vector<1x64x1xf32> to vector<64x1xf32>
    %88 = vector.broadcast %87 : vector<64x1xf32> to vector<64x64xf32>
    %89 = arith.addf %85, %88 : vector<64x64xf32>
    %90 = vector.extract_strided_slice %89 {offsets = [0, 0], sizes = [32, 64], strides = [1, 1]} : vector<64x64xf32> to vector<32x64xf32>
    %91 = math.tanh %90 : vector<32x64xf32>
    %92 = vector.extract_strided_slice %89 {offsets = [32, 0], sizes = [32, 64], strides = [1, 1]} : vector<64x64xf32> to vector<32x64xf32>
    %93 = arith.negf %92 : vector<32x64xf32>
    %94 = math.exp %93 : vector<32x64xf32>
    %cst_56 = arith.constant 1.000000e+00 : f32
    %95 = vector.broadcast %cst_56 : f32 to vector<32x64xf32>
    %96 = arith.addf %95, %94 : vector<32x64xf32>
    %97 = arith.divf %95, %96 : vector<32x64xf32>
    %98 = arith.mulf %91, %97 : vector<32x64xf32>
    %99 = arith.truncf %98 : vector<32x64xf32> to vector<32x64xbf16>
    %c2_57 = arith.constant 2 : index
    %c0_58 = arith.constant 0 : index
    %c0_59 = arith.constant 0 : index
    %100 = vector.load %arg6[%c2_57, %c0_58, %c0_59] : memref<3x64x32xbf16, #tpu.memory_space<vmem>>, vector<1x64x32xbf16>
    %101 = vector.shape_cast %100 : vector<1x64x32xbf16> to vector<64x32xbf16>
    %c2_60 = arith.constant 2 : index
    %c0_61 = arith.constant 0 : index
    %c0_62 = arith.constant 0 : index
    %102 = vector.load %arg7[%c2_60, %c0_61, %c0_62] : memref<3x64x1xf32, #tpu.memory_space<vmem>>, vector<1x64x1xf32>
    %103 = vector.shape_cast %102 : vector<1x64x1xf32> to vector<64x1xf32>
    %104 = vector.extract_strided_slice %101 {offsets = [32, 0], sizes = [32, 32], strides = [1, 1]} : vector<64x32xbf16> to vector<32x32xbf16>
    %cst_63 = arith.constant dense<0.000000e+00> : vector<32x64xf32>
    %105 = tpu.matmul %104, %99, %cst_63 {dimension_numbers = #tpu.dot_dimension_numbers<[1], [0], [0], [1], [0, 0, 1, 1], [], []>} : vector<32x32xbf16>, vector<32x64xbf16>, vector<32x64xf32> -> vector<32x64xf32>
    %106 = vector.extract_strided_slice %103 {offsets = [32, 0], sizes = [32, 1], strides = [1, 1]} : vector<64x1xf32> to vector<32x1xf32>
    %107 = vector.broadcast %106 : vector<32x1xf32> to vector<32x64xf32>
    %108 = arith.addf %105, %107 : vector<32x64xf32>
    %109 = arith.addf %77, %108 : vector<32x64xf32>
    %110 = vector.broadcast %1 : vector<1x64xf32> to vector<32x64xf32>
    %111 = arith.mulf %109, %110 : vector<32x64xf32>
    %c0_64 = arith.constant 0 : index
    %c0_65 = arith.constant 0 : index
    %c0_66 = arith.constant 0 : index
    %112 = vector.load %arg8[%c0_64, %c0_65, %c0_66] : memref<1x32x64xf32, #tpu.memory_space<vmem>>, vector<1x32x64xf32>
    %113 = vector.shape_cast %112 : vector<1x32x64xf32> to vector<32x64xf32>
    %114 = vector.shape_cast %111 : vector<32x64xf32> to vector<1x32x64xf32>
    tpu.vector_store %arg8[%c0_64, %c0_65, %c0_66], %114 {strides = array<i32>} : memref<1x32x64xf32, #tpu.memory_space<vmem>>, vector<1x32x64xf32>,
    return
  }
  func.func @transform_0(%arg0: i32) -> (i32, i32, i32) {
    %c0_i32 = arith.constant 0 : i32
    %c0_i32_0 = arith.constant 0 : i32
    %c0_i32_1 = arith.constant 0 : i32
    return %arg0, %c0_i32, %c0_i32_0 : i32, i32, i32
  }
  func.func @transform_1(%arg0: i32) -> (i32, i32, i32) {
    %c0_i32 = arith.constant 0 : i32
    %c0_i32_0 = arith.constant 0 : i32
    %c0_i32_1 = arith.constant 0 : i32
    return %arg0, %c0_i32, %c0_i32_0 : i32, i32, i32
  }
  func.func @transform_2(%arg0: i32) -> (i32, i32, i32) {
    %c0_i32 = arith.constant 0 : i32
    %c0_i32_0 = arith.constant 0 : i32
    %c0_i32_1 = arith.constant 0 : i32
    return %arg0, %c0_i32, %c0_i32_0 : i32, i32, i32
  }
  func.func @transform_3(%arg0: i32) -> (i32, i32, i32) {
    %c0_i32 = arith.constant 0 : i32
    %c0_i32_0 = arith.constant 0 : i32
    %c0_i32_1 = arith.constant 0 : i32
    %c0_i32_2 = arith.constant 0 : i32
    return %c0_i32, %c0_i32_0, %c0_i32_1 : i32, i32, i32
  }
  func.func @transform_4(%arg0: i32) -> (i32, i32, i32) {
    %c0_i32 = arith.constant 0 : i32
    %c0_i32_0 = arith.constant 0 : i32
    %c0_i32_1 = arith.constant 0 : i32
    %c0_i32_2 = arith.constant 0 : i32
    return %c0_i32, %c0_i32_0, %c0_i32_1 : i32, i32, i32
  }
  func.func @transform_5(%arg0: i32) -> (i32, i32, i32) {
    %c0_i32 = arith.constant 0 : i32
    %c0_i32_0 = arith.constant 0 : i32
    %c0_i32_1 = arith.constant 0 : i32
    %c0_i32_2 = arith.constant 0 : i32
    return %c0_i32, %c0_i32_0, %c0_i32_1 : i32, i32, i32
  }
  func.func @transform_6(%arg0: i32) -> (i32, i32, i32) {
    %c0_i32 = arith.constant 0 : i32
    %c0_i32_0 = arith.constant 0 : i32
    %c0_i32_1 = arith.constant 0 : i32
    %c0_i32_2 = arith.constant 0 : i32
    return %c0_i32, %c0_i32_0, %c0_i32_1 : i32, i32, i32
  }
  func.func @transform_7(%arg0: i32) -> (i32, i32, i32) {
    %c0_i32 = arith.constant 0 : i32
    %c0_i32_0 = arith.constant 0 : i32
    %c0_i32_1 = arith.constant 0 : i32
    return %arg0, %c0_i32, %c0_i32_0 : i32, i32, i32
  }
}

</mosaic_0001>

<llo_original>
// kernel: tpu_custom_call.1
$region0: #{tpu_custom_call.1}
  #allocation0 [shape = 'u32[]', space=smem, size = 0x4, offset = 0x4, fixed_abs, tag = 'smem constant byte address 0x4 - core index']
  #allocation1 [shape = 'u32[72,128]{1,0:T(1,128)}', space=vmem, size = 0x9000, scoped, tag = 'internal scratch']
  #allocation2 [shape = 'bf16[32,320]{1,0:T(8,128)(2,1)}', space=vmem, size = 0x6000, scoped, tag = 'scratch operand']
  %s0 = inlined_call_operand.vmem [shape: f32[2,32,64], index: 0, kind: input, shape index: {}]
  %s1 = inlined_call_operand.vmem [shape: f32[2,1,64], index: 1, kind: input, shape index: {}]
  %s2 = inlined_call_operand.vmem [shape: f32[2,16,64], index: 2, kind: input, shape index: {}]
  %s3 = inlined_call_operand.vmem [shape: bf16[3,64,112], index: 3, kind: input, shape index: {}]
  %s4 = inlined_call_operand.vmem [shape: f32[3,64,1], index: 4, kind: input, shape index: {}]
  %s5 = inlined_call_operand.vmem [shape: bf16[3,64,32], index: 5, kind: input, shape index: {}]
  %s6 = inlined_call_operand.vmem [shape: f32[3,64,1], index: 6, kind: input, shape index: {}]
  %s7 = inlined_call_operand.hbm [shape: f32[2,32,64], index: 7, kind: output, shape index: {}]
  %s8 = sld [smem:[#allocation0]]
  $region61: #{tpu_custom_call.1} parent=0
    _
  %s10 = ssub.s32 1, %s8
  %s11 = scalar_select 0, %s10, %s8
  $region1: #{tpu_custom_call.1} parent=0
    #allocation3 [shape = 'u8[32768]{0}', space=vmem, size = 0x8000, scoped, tag = 'output window, operand 0']
    #allocation4 [shape = 's32[2]{0}', space=sflag, size = 0x8, scoped, tag = 'scoped memory for tpu_custom_call.1']
    %12 = vsyncpa [#allocation4], 0
    %s13 = scalar_lea.sflag [#allocation4], 1
    %14 = vsyncpa %s13, 0
    loop: start=0, step=1, limit=4
    $region2: #{tpu_custom_call.1} parent=1 // loop_pre_header
      _
    $region3: #{tpu_custom_call.1} parent=1 // loop_header
      %s16 = sphi 0, %s20
      %p17 = scmp.ge.s32.totalorder %s16, 4
      %s26 = sphi 0, %s28
      %s29 = sphi 0, %s26
      %s30 = sphi 0, %s29
      %s46 = sphi 0, %s30
      %s52 = sphi 0, %s54
      %s55 = sphi 0, %s52
      %s56 = sphi 0, %s55
      %s72 = sphi 0, %s56
      %s78 = sphi 0, %s80
      %s81 = sphi 0, %s78
      %s82 = sphi 0, %s81
      %s98 = sphi 0, %s82
      %s102 = sphi 0, %s102
      %s104 = sphi 0, %s102
      %s105 = sphi 0, %s104
      %s119 = sphi 0, %s105
      %s123 = sphi 0, %s123
      %s125 = sphi 0, %s123
      %s126 = sphi 0, %s125
      %s140 = sphi 0, %s126
      %s144 = sphi 0, %s144
      %s146 = sphi 0, %s144
      %s147 = sphi 0, %s146
      %s161 = sphi 0, %s147
      %s165 = sphi 0, %s165
      %s167 = sphi 0, %s165
      %s168 = sphi 0, %s167
      %s182 = sphi 0, %s168
      %s188 = sphi 0, %s190
      %s191 = sphi 0, %s188
      %s192 = sphi 0, %s191
      %s208 = sphi 0, %s192
    $region4: #{tpu_custom_call.1} parent=1 // loop_header_branch
      %19 = sbr.rel (%p17) target = $region8
    $region5: #{tpu_custom_call.1} parent=1 // loop_body
      %s21 = ssub.s32 %s16, 1
      %s22 = ssub.s32 %s16, 2
      %s23 = sadd.s32 %s16, 1
      %s24 = ssub.s32 %s16, %s23
      %p25 = scmp.eq.s32.totalorder %s24, 0
      %s27 = sadd.s32 %s26, 1
      %s28 = scalar_select %p25, %s26, %s27
      %p31 = pneg %p25
      %p32 = scmp.eq.s32.totalorder %s16, 1
      %p33 = por %p31, %p32
      %p34 = scmp.ne.s32.totalorder %s26, %s29
      %p35 = scmp.eq.s32.totalorder %s16, 0
      %p36 = por %p34, %p35
      %p37 = scmp.ne.s32.totalorder %s26, %s29
      %p38 = scmp.eq.s32.totalorder %s21, 1
      %p39 = por %p37, %p38
      %p40 = scmp.ne.s32.totalorder %s29, %s30
      %p41 = scmp.eq.s32.totalorder %s21, 0
      %p42 = por %p40, %p41
      %p43 = scmp.ne.s32.totalorder %s29, %s30
      %p44 = scmp.eq.s32.totalorder %s22, 1
      %p45 = por %p43, %p44
      %p47 = scmp.ne.s32.totalorder %s30, %s46
      %p48 = scmp.eq.s32.totalorder %s22, 0
      %p49 = por %p47, %p48
      %s50 = ssub.s32 %s16, %s23
      %p51 = scmp.eq.s32.totalorder %s50, 0
      %s53 = sadd.s32 %s52, 1
      %s54 = scalar_select %p51, %s52, %s53
      %p57 = pneg %p51
      %p58 = scmp.eq.s32.totalorder %s16, 1
      %p59 = por %p57, %p58
      %p60 = scmp.ne.s32.totalorder %s52, %s55
      %p61 = scmp.eq.s32.totalorder %s16, 0
      %p62 = por %p60, %p61
      %p63 = scmp.ne.s32.totalorder %s52, %s55
      %p64 = scmp.eq.s32.totalorder %s21, 1
      %p65 = por %p63, %p64
      %p66 = scmp.ne.s32.totalorder %s55, %s56
      %p67 = scmp.eq.s32.totalorder %s21, 0
      %p68 = por %p66, %p67
      %p69 = scmp.ne.s32.totalorder %s55, %s56
      %p70 = scmp.eq.s32.totalorder %s22, 1
      %p71 = por %p69, %p70
      %p73 = scmp.ne.s32.totalorder %s56, %s72
      %p74 = scmp.eq.s32.totalorder %s22, 0
      %p75 = por %p73, %p74
      %s76 = ssub.s32 %s16, %s23
      %p77 = scmp.eq.s32.totalorder %s76, 0
      %s79 = sadd.s32 %s78, 1
      %s80 = scalar_select %p77, %s78, %s79
      %p83 = pneg %p77
      %p84 = scmp.eq.s32.totalorder %s16, 1
      %p85 = por %p83, %p84
      %p86 = scmp.ne.s32.totalorder %s78, %s81
      %p87 = scmp.eq.s32.totalorder %s16, 0
      %p88 = por %p86, %p87
      %p89 = scmp.ne.s32.totalorder %s78, %s81
      %p90 = scmp.eq.s32.totalorder %s21, 1
      %p91 = por %p89, %p90
      %p92 = scmp.ne.s32.totalorder %s81, %s82
      %p93 = scmp.eq.s32.totalorder %s21, 0
      %p94 = por %p92, %p93
      %p95 = scmp.ne.s32.totalorder %s81, %s82
      %p96 = scmp.eq.s32.totalorder %s22, 1
      %p97 = por %p95, %p96
      %p99 = scmp.ne.s32.totalorder %s82, %s98
      %p100 = scmp.eq.s32.totalorder %s22, 0
      %p101 = por %p99, %p100
      %s103 = sadd.s32 %s102, 1
      %p106 = scmp.eq.s32.totalorder %s16, 1
      %p107 = scmp.ne.s32.totalorder %s102, %s104
      %p108 = scmp.eq.s32.totalorder %s16, 0
      %p109 = por %p107, %p108
      %p110 = scmp.ne.s32.totalorder %s102, %s104
      %p111 = scmp.eq.s32.totalorder %s21, 1
      %p112 = por %p110, %p111
      %p113 = scmp.ne.s32.totalorder %s104, %s105
      %p114 = scmp.eq.s32.totalorder %s21, 0
      %p115 = por %p113, %p114
      %p116 = scmp.ne.s32.totalorder %s104, %s105
      %p117 = scmp.eq.s32.totalorder %s22, 1
      %p118 = por %p116, %p117
      %p120 = scmp.ne.s32.totalorder %s105, %s119
      %p121 = scmp.eq.s32.totalorder %s22, 0
      %p122 = por %p120, %p121
      %s124 = sadd.s32 %s123, 1
      %p127 = scmp.eq.s32.totalorder %s16, 1
      %p128 = scmp.ne.s32.totalorder %s123, %s125
      %p129 = scmp.eq.s32.totalorder %s16, 0
      %p130 = por %p128, %p129
      %p131 = scmp.ne.s32.totalorder %s123, %s125
      %p132 = scmp.eq.s32.totalorder %s21, 1
      %p133 = por %p131, %p132
      %p134 = scmp.ne.s32.totalorder %s125, %s126
      %p135 = scmp.eq.s32.totalorder %s21, 0
      %p136 = por %p134, %p135
      %p137 = scmp.ne.s32.totalorder %s125, %s126
      %p138 = scmp.eq.s32.totalorder %s22, 1
      %p139 = por %p137, %p138
      %p141 = scmp.ne.s32.totalorder %s126, %s140
      %p142 = scmp.eq.s32.totalorder %s22, 0
      %p143 = por %p141, %p142
      %s145 = sadd.s32 %s144, 1
      %p148 = scmp.eq.s32.totalorder %s16, 1
      %p149 = scmp.ne.s32.totalorder %s144, %s146
      %p150 = scmp.eq.s32.totalorder %s16, 0
      %p151 = por %p149, %p150
      %p152 = scmp.ne.s32.totalorder %s144, %s146
      %p153 = scmp.eq.s32.totalorder %s21, 1
      %p154 = por %p152, %p153
      %p155 = scmp.ne.s32.totalorder %s146, %s147
      %p156 = scmp.eq.s32.totalorder %s21, 0
      %p157 = por %p155, %p156
      %p158 = scmp.ne.s32.totalorder %s146, %s147
      %p159 = scmp.eq.s32.totalorder %s22, 1
      %p160 = por %p158, %p159
      %p162 = scmp.ne.s32.totalorder %s147, %s161
      %p163 = scmp.eq.s32.totalorder %s22, 0
      %p164 = por %p162, %p163
      %s166 = sadd.s32 %s165, 1
      %p169 = scmp.eq.s32.totalorder %s16, 1
      %p170 = scmp.ne.s32.totalorder %s165, %s167
      %p171 = scmp.eq.s32.totalorder %s16, 0
      %p172 = por %p170, %p171
      %p173 = scmp.ne.s32.totalorder %s165, %s167
      %p174 = scmp.eq.s32.totalorder %s21, 1
      %p175 = por %p173, %p174
      %p176 = scmp.ne.s32.totalorder %s167, %s168
      %p177 = scmp.eq.s32.totalorder %s21, 0
      %p178 = por %p176, %p177
      %p179 = scmp.ne.s32.totalorder %s167, %s168
      %p180 = scmp.eq.s32.totalorder %s22, 1
      %p181 = por %p179, %p180
      %p183 = scmp.ne.s32.totalorder %s168, %s182
      %p184 = scmp.eq.s32.totalorder %s22, 0
      %p185 = por %p183, %p184
      %s186 = ssub.s32 %s16, %s23
      %p187 = scmp.eq.s32.totalorder %s186, 0
      %s189 = sadd.s32 %s188, 1
      %s190 = scalar_select %p187, %s188, %s189
      %p193 = pneg %p187
      %p194 = scmp.eq.s32.totalorder %s16, 1
      %p195 = por %p193, %p194
      %p196 = scmp.ne.s32.totalorder %s188, %s191
      %p197 = scmp.eq.s32.totalorder %s16, 0
      %p198 = por %p196, %p197
      %p199 = scmp.ne.s32.totalorder %s188, %s191
      %p200 = scmp.eq.s32.totalorder %s21, 1
      %p201 = por %p199, %p200
      %p202 = scmp.ne.s32.totalorder %s191, %s192
      %p203 = scmp.eq.s32.totalorder %s21, 0
      %p204 = por %p202, %p203
      %p205 = scmp.ne.s32.totalorder %s191, %s192
      %p206 = scmp.eq.s32.totalorder %s22, 1
      %p207 = por %p205, %p206
      %p209 = scmp.ne.s32.totalorder %s192, %s208
      %p210 = scmp.eq.s32.totalorder %s22, 0
      %p211 = por %p209, %p210
      %p212 = scmp.le.s32.totalorder 1, %s16
      %p213 = scmp.lt.s32.totalorder %s16, 3
      %p214 = pnand %p212, %p213
      %p215 = pneg %p214
      // Predicated region
      $region9: #{tpu_custom_call.1} parent=5 // pred_check
        _
      $region10: #{tpu_custom_call.1} parent=5 // pred_check_branch
        %217 = sbr.rel (%p214) target = $region12
      $region11: #{tpu_custom_call.1} parent=5 // pred_region
        %s218 = ssub.s32 %s16, 1
        // Predicated region
        $region13: #{tpu_custom_call.1} parent=11 // pred_check
          %p219 = pneg %p115
        $region14: #{tpu_custom_call.1} parent=11 // pred_check_branch
          %221 = sbr.rel (%p219) target = $region16
        $region15: #{tpu_custom_call.1} parent=11 // pred_region
          _
        $region16: #{tpu_custom_call.1} parent=11 // pred_fallthru
          _
        // Predicated region
        $region17: #{tpu_custom_call.1} parent=11 // pred_check
          %p222 = pneg %p136
        $region18: #{tpu_custom_call.1} parent=11 // pred_check_branch
          %224 = sbr.rel (%p222) target = $region20
        $region19: #{tpu_custom_call.1} parent=11 // pred_region
          _
        $region20: #{tpu_custom_call.1} parent=11 // pred_fallthru
          _
        // Predicated region
        $region21: #{tpu_custom_call.1} parent=11 // pred_check
          %p225 = pneg %p157
        $region22: #{tpu_custom_call.1} parent=11 // pred_check_branch
          %227 = sbr.rel (%p225) target = $region24
        $region23: #{tpu_custom_call.1} parent=11 // pred_region
          _
        $region24: #{tpu_custom_call.1} parent=11 // pred_fallthru
          _
        // Predicated region
        $region25: #{tpu_custom_call.1} parent=11 // pred_check
          %p228 = pneg %p178
        $region26: #{tpu_custom_call.1} parent=11 // pred_check_branch
          %230 = sbr.rel (%p228) target = $region28
        $region27: #{tpu_custom_call.1} parent=11 // pred_region
          _
        $region28: #{tpu_custom_call.1} parent=11 // pred_fallthru
          _
      $region12: #{tpu_custom_call.1} parent=5 // pred_fallthru
        _
      %p231 = scmp.lt.s32.totalorder %s16, 2
      // Predicated region
      $region29: #{tpu_custom_call.1} parent=5 // pred_check
        %p232 = pneg %p231
      $region30: #{tpu_custom_call.1} parent=5 // pred_check_branch
        %234 = sbr.rel (%p232) target = $region32
      $region31: #{tpu_custom_call.1} parent=5 // pred_region
        // Predicated region
        $region33: #{tpu_custom_call.1} parent=31 // pred_check
          %p235 = pneg %p36
        $region34: #{tpu_custom_call.1} parent=31 // pred_check_branch
          %237 = sbr.rel (%p235) target = $region36
        $region35: #{tpu_custom_call.1} parent=31 // pred_region
          %p238 = scmp.lt.s32.totalorder %s16, 1
          %s239 = scalar_select %p238, %s16, 1
          %s240 = smul.addr %s239, 4
          %s241 = smul.addr %s240, 8
          %s242 = scalar_lea.vmem %s0, %s241
        $region36: #{tpu_custom_call.1} parent=31 // pred_fallthru
          _
        // Predicated region
        $region37: #{tpu_custom_call.1} parent=31 // pred_check
          %p243 = pneg %p62
        $region38: #{tpu_custom_call.1} parent=31 // pred_check_branch
          %245 = sbr.rel (%p243) target = $region40
        $region39: #{tpu_custom_call.1} parent=31 // pred_region
          %p246 = scmp.lt.s32.totalorder %s16, 1
          %s247 = scalar_select %p246, %s16, 1
          %s248 = scalar_lea.vmem %s1, %s247
        $region40: #{tpu_custom_call.1} parent=31 // pred_fallthru
          _
        // Predicated region
        $region41: #{tpu_custom_call.1} parent=31 // pred_check
          %p249 = pneg %p88
        $region42: #{tpu_custom_call.1} parent=31 // pred_check_branch
          %251 = sbr.rel (%p249) target = $region44
        $region43: #{tpu_custom_call.1} parent=31 // pred_region
          %p252 = scmp.lt.s32.totalorder %s16, 1
          %s253 = scalar_select %p252, %s16, 1
          %s254 = smul.addr %s253, 2
          %s255 = smul.addr %s254, 8
          %s256 = scalar_lea.vmem %s2, %s255
        $region44: #{tpu_custom_call.1} parent=31 // pred_fallthru
          _
      $region32: #{tpu_custom_call.1} parent=5 // pred_fallthru
        _
      %p257 = scmp.le.s32.totalorder 1, %s16
      %p258 = scmp.lt.s32.totalorder %s16, 3
      %p259 = pnand %p257, %p258
      %p260 = pneg %p259
      // Predicated region
      $region45: #{tpu_custom_call.1} parent=5 // pred_check
        _
      $region46: #{tpu_custom_call.1} parent=5 // pred_check_branch
        %262 = sbr.rel (%p259) target = $region48
      $region47: #{tpu_custom_call.1} parent=5 // pred_region
        %s263 = ssub.s32 %s16, 1
        %p264 = scmp.lt.s32.totalorder %s21, 1
        %s265 = scalar_select %p264, %s21, 1
        %s266 = smul.addr %s265, 4
        %s267 = smul.addr %s266, 8
        %s268 = scalar_lea.vmem %s0, %s267
        %p269 = pneg %p42
        %p270 = pneg %p39
        %p271 = scmp.lt.s32.totalorder %s21, 1
        %s272 = scalar_select %p271, %s21, 1
        %s273 = scalar_lea.vmem %s1, %s272
        %p274 = pneg %p68
        %p275 = pneg %p65
        %p276 = scmp.lt.s32.totalorder %s21, 1
        %s277 = scalar_select %p276, %s21, 1
        %s278 = smul.addr %s277, 2
        %s279 = smul.addr %s278, 8
        %s280 = scalar_lea.vmem %s2, %s279
        %p281 = pneg %p94
        %p282 = pneg %p91
        %p283 = pneg %p115
        %p284 = pneg %p112
        %p285 = pneg %p136
        %p286 = pneg %p133
        %p287 = pneg %p157
        %p288 = pneg %p154
        %p289 = pneg %p178
        %p290 = pneg %p175
        %p291 = pneg %p204
        %p292 = pneg %p201
        %s293 = sand.u32 %s191, 1
        %s294 = scalar_lea.sflag [#allocation4], %s293
        %s295 = sand.u32 %s191, 1
        %s296 = smul.addr %s295, 32
        %s297 = scalar_lea.vmem [#allocation3], %s296
        %p298 = scmp.lt.s32.totalorder %s21, 1
        %s299 = scalar_select %p298, %s21, 1
        %s300 = smul.addr %s299, 4
        %s301 = smul.addr %s300, 8
        %s302 = scalar_lea.vmem %s0, %s301
        %p303 = scmp.lt.s32.totalorder %s21, 1
        %s304 = scalar_select %p303, %s21, 1
        %s305 = scalar_lea.vmem %s1, %s304
        %p306 = scmp.lt.s32.totalorder %s21, 1
        %s307 = scalar_select %p306, %s21, 1
        %s308 = smul.addr %s307, 2
        %s309 = smul.addr %s308, 8
        %s310 = scalar_lea.vmem %s2, %s309
        %v312 = vld [vmem:[%s305] sm:$0x1]
        %v313 = vld [vmem:[%s310] sm:$0xff]
        %v314 = vld [vmem:[%s310 + $0x8] sm:$0xff]
        %v315 = vpack.c.bf16 %v313, %v313
        %v316 = vpack.c.bf16 %v314, %v314
        %v317 = vld [vmem:[%s302] sm:$0xff]
        %v318 = vld [vmem:[%s302 + $0x8] sm:$0xff]
        %v319 = vld [vmem:[%s302 + $0x10] sm:$0xff]
        %v320 = vld [vmem:[%s302 + $0x18] sm:$0xff]
        %321 = vst [vmem:[#allocation2] sm:$0xff] 0
        %vm322 = vcmask 519168
        %323 = vst.msk [vmem:[#allocation2 + $0x8] sm:$0xf] %vm322, 0
        %324 = vst [vmem:[#allocation2 + $0xc] sm:$0xff] 0
        %325 = vst.msk [vmem:[#allocation2 + $0x14] sm:$0xf] %vm322, 0
        %326 = vst [vmem:[#allocation2 + $0x18] sm:$0xff] 0
        %327 = vst.msk [vmem:[#allocation2 + $0x20] sm:$0xf] %vm322, 0
        %328 = vst [vmem:[#allocation2 + $0x24] sm:$0xff] 0
        %329 = vst.msk [vmem:[#allocation2 + $0x2c] sm:$0xf] %vm322, 0
        %v330 = vpack.c.bf16 %v317, %v317
        %v331 = vpack.c.bf16 %v318, %v318
        %v332 = vpack.c.bf16 %v319, %v319
        %v333 = vpack.c.bf16 %v320, %v320
        %334 = vst.msk [vmem:[#allocation2 + $0x4] sm:$0xf] %vm322, %v330
        %335 = vst.msk [vmem:[#allocation2 + $0x10] sm:$0xf] %vm322, %v331
        %336 = vst.msk [vmem:[#allocation2 + $0x1c] sm:$0xf] %vm322, %v332
        %337 = vst.msk [vmem:[#allocation2 + $0x28] sm:$0xf] %vm322, %v333
        %v338 = vld [vmem:[#allocation2] sm:$0xff]
        %v339 = vld [vmem:[#allocation2 + $0xc] sm:$0xff]
        %v340 = vld [vmem:[#allocation2 + $0x18] sm:$0xff]
        %v341 = vld [vmem:[#allocation2 + $0x24] sm:$0xff]
        %v342 = vld [vmem:[#allocation2 + $0x4] sm:$0xf]
        %v343 = vld [vmem:[#allocation2 + $0x10] sm:$0xf]
        %v344 = vld [vmem:[#allocation2 + $0x1c] sm:$0xf]
        %v345 = vld [vmem:[#allocation2 + $0x28] sm:$0xf]
        %v350 = vunpack.c.l.b16 %v338
        %v351 = vunpack.c.h.b16 %v338
        %v352 = vunpack.c.l.b16 %v339
        %v353 = vunpack.c.h.b16 %v339
        %v354 = vunpack.c.l.b16 %v340
        %v355 = vunpack.c.h.b16 %v340
        %v356 = vunpack.c.l.b16 %v341
        %v357 = vunpack.c.h.b16 %v341
        %v358 = vpack.c.b16 %v352, %v350
        %v359 = vpack.c.b16 %v353, %v351
        %v360 = vpack.c.b16 %v356, %v354
        %v361 = vpack.c.b16 %v357, %v355
        %v366 = vunpack.c.l.b16 %v330
        %v367 = vunpack.c.l.b16 %v331
        %v368 = vunpack.c.l.b16 %v332
        %v369 = vunpack.c.l.b16 %v333
        %v370 = vpack.c.b16 %v367, %v366
        %v371 = vpack.c.b16 %v369, %v368
        %372 = vrot.lane.b32.xlu0 %v370, 127
        %v373 = vpop.permute.xlu0 %372
        %374 = vrot.lane.b32.xlu0 %v371, 127
        %v375 = vpop.permute.xlu0 %374
        %v380 = vunpack.c.l.b16 %v342
        %v381 = vunpack.c.l.b16 %v343
        %v382 = vunpack.c.l.b16 %v344
        %v383 = vunpack.c.l.b16 %v345
        %v384 = vpack.c.b16 %v381, %v380
        %v385 = vpack.c.b16 %v383, %v382
        %386 = vrot.lane.b32.xlu0 %v384, 126
        %v387 = vpop.permute.xlu0 %386
        %388 = vrot.lane.b32.xlu0 %v385, 126
        %v389 = vpop.permute.xlu0 %388
        %v392 = vunpack.c.l.b16 %v315
        %v393 = vunpack.c.l.b16 %v316
        %v394 = vpack.c.b16 %v393, %v392
        %395 = vrot.lane.b32.xlu0 %v394, 127
        %v396 = vpop.permute.xlu0 %395
        %v397 = vld [vmem:[%s3] sm:$0xf]
        %v398 = vld [vmem:[%s3 + $0x4] sm:$0xf]
        %v399 = vld [vmem:[%s3 + $0x8] sm:$0xf]
        %v400 = vld [vmem:[%s3 + $0xc] sm:$0xf]
        %v401 = vld [vmem:[%s3 + $0x10] sm:$0xf]
        %v402 = vld [vmem:[%s3 + $0x14] sm:$0xf]
        %v403 = vld [vmem:[%s3 + $0x18] sm:$0xf]
        %v404 = vld [vmem:[%s3 + $0x1c] sm:$0xf]
        %v405 = vld [vmem:[%s4] sm:$0xff]
        %v406 = vld [vmem:[%s4 + $0x8] sm:$0xff]
        %v407 = vld [vmem:[%s4 + $0x10] sm:$0xff]
        %v408 = vld [vmem:[%s4 + $0x18] sm:$0xff]
        %v409 = vld [vmem:[%s4 + $0x20] sm:$0xff]
        %v410 = vld [vmem:[%s4 + $0x28] sm:$0xff]
        %v411 = vld [vmem:[%s4 + $0x30] sm:$0xff]
        %v412 = vld [vmem:[%s4 + $0x38] sm:$0xff]
        %414 = vset.pattern.permute.xlu0 0
        %415 = vperm.xlu0 %414, %v405
        %v416 = vpop.permute.xlu0 %415
        %419 = vset.pattern.permute.xlu0 0
        %420 = vperm.xlu0 %419, %v406
        %v421 = vpop.permute.xlu0 %420
        %424 = vset.pattern.permute.xlu0 0
        %425 = vperm.xlu0 %424, %v407
        %v426 = vpop.permute.xlu0 %425
        %429 = vset.pattern.permute.xlu0 0
        %430 = vperm.xlu0 %429, %v408
        %v431 = vpop.permute.xlu0 %430
        %434 = vset.pattern.permute.xlu0 0
        %435 = vperm.xlu0 %434, %v409
        %v436 = vpop.permute.xlu0 %435
        %439 = vset.pattern.permute.xlu0 0
        %440 = vperm.xlu0 %439, %v410
        %v441 = vpop.permute.xlu0 %440
        %444 = vset.pattern.permute.xlu0 0
        %445 = vperm.xlu0 %444, %v411
        %v446 = vpop.permute.xlu0 %445
        %449 = vset.pattern.permute.xlu0 0
        %450 = vperm.xlu0 %449, %v412
        %v451 = vpop.permute.xlu0 %450
        %v461 = vunpack.c.l.b16 %v397
        %v462 = vunpack.c.l.b16 %v398
        %v463 = vunpack.c.l.b16 %v399
        %v464 = vunpack.c.l.b16 %v400
        %v465 = vunpack.c.l.b16 %v401
        %v466 = vunpack.c.l.b16 %v402
        %v467 = vunpack.c.l.b16 %v403
        %v468 = vunpack.c.l.b16 %v404
        %v469 = vpack.c.b16 %v462, %v461
        %v470 = vpack.c.b16 %v464, %v463
        %v471 = vpack.c.b16 %v466, %v465
        %v472 = vpack.c.b16 %v468, %v467
        %473 = vrot.lane.b32.xlu0 %v358, 1
        %v474 = vpop.permute.xlu0 %473
        %475 = vrot.lane.b32.xlu0 %v359, 1
        %v476 = vpop.permute.xlu0 %475
        %477 = vrot.lane.b32.xlu0 %v360, 1
        %v478 = vpop.permute.xlu0 %477
        %479 = vrot.lane.b32.xlu0 %v361, 1
        %v480 = vpop.permute.xlu0 %479
        %481 = vrot.lane.b32.xlu0 %v373, 1
        %v482 = vpop.permute.xlu0 %481
        %483 = vrot.lane.b32.xlu0 %v375, 1
        %v484 = vpop.permute.xlu0 %483
        %485 = vrot.lane.b32.xlu0 %v387, 1
        %v486 = vpop.permute.xlu0 %485
        %487 = vrot.lane.b32.xlu0 %v389, 1
        %v488 = vpop.permute.xlu0 %487
        %489 = vrot.lane.b32.xlu0 %v396, 1
        %v490 = vpop.permute.xlu0 %489
        %vm491 = vcmask 7168
        %v492 = vsel %vm491, %v474, %v476
        %v493 = vsel %vm491, %v478, %v480
        %vm501 = vcmask 916480
        %v503 = vsel %vm501, %v469, 0
        %v506 = vsel %vm501, %v470, 0
        %v509 = vsel %vm501, %v471, 0
        %v512 = vsel %vm501, %v472, 0
        %514 = vmatpush.bf16.msra.mxu0 0
        %515 = vmatpush.bf16.msra.mxu0 %v490
        %516 = vmatpush.bf16.msra.mxu0 %v488
        %517 = vmatpush.bf16.msra.mxu0 %v486
        %518 = vmatpush.bf16.msra.mxu0 %v484
        %519 = vmatpush.bf16.msra.mxu0 %v482
        %520 = vmatpush.bf16.msra.mxu0 %v493
        %521 = vmatpush.bf16.msra.mxu0 %v492
        %522 = vmatmul.bf16.gmra.mxu0 %v503
        %v523 = vpop.f32.mrf.mxu0
        %v524 = vadd.f32 %v416, %v523
        %v525 = vpop.f32.mrf.mxu0
        %v526 = vadd.f32 %v421, %v525
        %527 = vmatmul.bf16.gmra.mxu0 %v506
        %v528 = vpop.f32.mrf.mxu0
        %v529 = vadd.f32 %v426, %v528
        %v530 = vpop.f32.mrf.mxu0
        %v531 = vadd.f32 %v431, %v530
        %532 = vmatmul.bf16.gmra.mxu0 %v509
        %v533 = vpop.f32.mrf.mxu0
        %v534 = vadd.f32 %v436, %v533
        %v535 = vpop.f32.mrf.mxu0
        %v536 = vadd.f32 %v441, %v535
        %537 = vmatmul.bf16.gmra.mxu0 %v512
        %v538 = vpop.f32.mrf.mxu0
        %v539 = vadd.f32 %v446, %v538
        %v540 = vpop.f32.mrf.mxu0
        %v541 = vadd.f32 %v451, %v540
        %542 = vdwg.mxu0
        %v543 = vtanh.pop %v524
        %v544 = vtanh.pop %v526
        %v545 = vtanh.pop %v529
        %v546 = vtanh.pop %v531
        %v547 = vxor.u32 %v534, 2147483648
        %v548 = vxor.u32 %v536, 2147483648
        %v549 = vxor.u32 %v539, 2147483648
        %v550 = vxor.u32 %v541, 2147483648
        %v551 = vmul.f32 %v547, 1.442695
        %v552 = vpow.pop %v551
        %v553 = vmul.f32 %v548, 1.442695
        %v554 = vpow.pop %v553
        %v555 = vmul.f32 %v549, 1.442695
        %v556 = vpow.pop %v555
        %v557 = vmul.f32 %v550, 1.442695
        %v558 = vpow.pop %v557
        %v559 = vadd.f32 %v552, 1.0
        %v560 = vadd.f32 %v554, 1.0
        %v561 = vadd.f32 %v556, 1.0
        %v562 = vadd.f32 %v558, 1.0
        %v563 = vrcp.pop %v559
        %v564 = vmul.f32 %v559, %v563
        %v565 = vsub.f32 1.0, %v564
        %v566 = vmul.f32 %v563, %v565
        %v567 = vadd.f32 %v563, %v566
        %vm568 = vweird.f32 %v559
        %vm569 = vweird.f32 %v563
        %vm570 = vmor %vm568, %vm569
        %v571 = vsel %vm570, %v563, %v567
        %v572 = vand.u32 2147483647, %v559
        %vm573 = vcmp.eq.f32.partialorder %v572, 8.507059e+37
        %v574 = vand.u32 %v559, 2147483648
        %v575 = vor.u32 1.1754944e-38, %v574
        %v576 = vsel %vm573, %v575, %v571
        %v577 = vmul.f32 1.0, %v576
        %v578 = vrcp.pop %v560
        %v579 = vmul.f32 %v560, %v578
        %v580 = vsub.f32 1.0, %v579
        %v581 = vmul.f32 %v578, %v580
        %v582 = vadd.f32 %v578, %v581
        %vm583 = vweird.f32 %v560
        %vm584 = vweird.f32 %v578
        %vm585 = vmor %vm583, %vm584
        %v586 = vsel %vm585, %v578, %v582
        %v587 = vand.u32 2147483647, %v560
        %vm588 = vcmp.eq.f32.partialorder %v587, 8.507059e+37
        %v589 = vand.u32 %v560, 2147483648
        %v590 = vor.u32 1.1754944e-38, %v589
        %v591 = vsel %vm588, %v590, %v586
        %v592 = vmul.f32 1.0, %v591
        %v593 = vrcp.pop %v561
        %v594 = vmul.f32 %v561, %v593
        %v595 = vsub.f32 1.0, %v594
        %v596 = vmul.f32 %v593, %v595
        %v597 = vadd.f32 %v593, %v596
        %vm598 = vweird.f32 %v561
        %vm599 = vweird.f32 %v593
        %vm600 = vmor %vm598, %vm599
        %v601 = vsel %vm600, %v593, %v597
        %v602 = vand.u32 2147483647, %v561
        %vm603 = vcmp.eq.f32.partialorder %v602, 8.507059e+37
        %v604 = vand.u32 %v561, 2147483648
        %v605 = vor.u32 1.1754944e-38, %v604
        %v606 = vsel %vm603, %v605, %v601
        %v607 = vmul.f32 1.0, %v606
        %v608 = vrcp.pop %v562
        %v609 = vmul.f32 %v562, %v608
        %v610 = vsub.f32 1.0, %v609
        %v611 = vmul.f32 %v608, %v610
        %v612 = vadd.f32 %v608, %v611
        %vm613 = vweird.f32 %v562
        %vm614 = vweird.f32 %v608
        %vm615 = vmor %vm613, %vm614
        %v616 = vsel %vm615, %v608, %v612
        %v617 = vand.u32 2147483647, %v562
        %vm618 = vcmp.eq.f32.partialorder %v617, 8.507059e+37
        %v619 = vand.u32 %v562, 2147483648
        %v620 = vor.u32 1.1754944e-38, %v619
        %v621 = vsel %vm618, %v620, %v616
        %v622 = vmul.f32 1.0, %v621
        %v623 = vmul.f32 %v543, %v577
        %v624 = vmul.f32 %v544, %v592
        %v625 = vmul.f32 %v545, %v607
        %v626 = vmul.f32 %v546, %v622
        %v627 = vpack.c.bf16 %v624, %v623
        %v628 = vpack.c.bf16 %v626, %v625
        %v629 = vld [vmem:[%s5] sm:$0xf]
        %v630 = vld [vmem:[%s5 + $0x4] sm:$0xf]
        %v631 = vld [vmem:[%s5 + $0x8] sm:$0xf]
        %v632 = vld [vmem:[%s5 + $0xc] sm:$0xf]
        %v633 = vld [vmem:[%s5 + $0x10] sm:$0xf]
        %v634 = vld [vmem:[%s5 + $0x14] sm:$0xf]
        %v635 = vld [vmem:[%s5 + $0x18] sm:$0xf]
        %v636 = vld [vmem:[%s5 + $0x1c] sm:$0xf]
        %v637 = vld [vmem:[%s6] sm:$0xff]
        %v638 = vld [vmem:[%s6 + $0x8] sm:$0xff]
        %v639 = vld [vmem:[%s6 + $0x10] sm:$0xff]
        %v640 = vld [vmem:[%s6 + $0x18] sm:$0xff]
        %v641 = vld [vmem:[%s6 + $0x20] sm:$0xff]
        %v642 = vld [vmem:[%s6 + $0x28] sm:$0xff]
        %v643 = vld [vmem:[%s6 + $0x30] sm:$0xff]
        %v644 = vld [vmem:[%s6 + $0x38] sm:$0xff]
        %646 = vset.pattern.permute.xlu0 0
        %647 = vperm.xlu0 %646, %v637
        %v648 = vpop.permute.xlu0 %647
        %651 = vset.pattern.permute.xlu0 0
        %652 = vperm.xlu0 %651, %v638
        %v653 = vpop.permute.xlu0 %652
        %656 = vset.pattern.permute.xlu0 0
        %657 = vperm.xlu0 %656, %v639
        %v658 = vpop.permute.xlu0 %657
        %661 = vset.pattern.permute.xlu0 0
        %662 = vperm.xlu0 %661, %v640
        %v663 = vpop.permute.xlu0 %662
        %666 = vset.pattern.permute.xlu0 0
        %667 = vperm.xlu0 %666, %v641
        %v668 = vpop.permute.xlu0 %667
        %671 = vset.pattern.permute.xlu0 0
        %672 = vperm.xlu0 %671, %v642
        %v673 = vpop.permute.xlu0 %672
        %676 = vset.pattern.permute.xlu0 0
        %677 = vperm.xlu0 %676, %v643
        %v678 = vpop.permute.xlu0 %677
        %681 = vset.pattern.permute.xlu0 0
        %682 = vperm.xlu0 %681, %v644
        %v683 = vpop.permute.xlu0 %682
        %v693 = vunpack.c.l.b16 %v629
        %v694 = vunpack.c.l.b16 %v630
        %v695 = vunpack.c.l.b16 %v631
        %v696 = vunpack.c.l.b16 %v632
        %v697 = vunpack.c.l.b16 %v633
        %v698 = vunpack.c.l.b16 %v634
        %v699 = vunpack.c.l.b16 %v635
        %v700 = vunpack.c.l.b16 %v636
        %v701 = vpack.c.b16 %v694, %v693
        %v702 = vpack.c.b16 %v696, %v695
        %v703 = vpack.c.b16 %v698, %v697
        %v704 = vpack.c.b16 %v700, %v699
        %vm705 = vcmask 261120
        %v707 = vsel %vm705, %v701, 0
        %v710 = vsel %vm705, %v702, 0
        %v713 = vsel %vm705, %v703, 0
        %v716 = vsel %vm705, %v704, 0
        %718 = vmatpush.bf16.msra.mxu0 0
        %719 = vmatpush.bf16.msra.mxu0 0
        %720 = vmatpush.bf16.msra.mxu0 0
        %721 = vmatpush.bf16.msra.mxu0 0
        %722 = vmatpush.bf16.msra.mxu0 0
        %723 = vmatpush.bf16.msra.mxu0 0
        %724 = vmatpush.bf16.msra.mxu0 %v628
        %725 = vmatpush.bf16.msra.mxu0 %v627
        %726 = vmatmul.bf16.gmra.mxu0 %v707
        %v727 = vpop.f32.mrf.mxu0
        %v728 = vadd.f32 %v648, %v727
        %v729 = vpop.f32.mrf.mxu0
        %v730 = vadd.f32 %v653, %v729
        %731 = vmatmul.bf16.gmra.mxu0 %v710
        %v732 = vpop.f32.mrf.mxu0
        %v733 = vadd.f32 %v658, %v732
        %v734 = vpop.f32.mrf.mxu0
        %v735 = vadd.f32 %v663, %v734
        %736 = vmatmul.bf16.gmra.mxu0 %v713
        %v737 = vpop.f32.mrf.mxu0
        %v738 = vadd.f32 %v668, %v737
        %v739 = vpop.f32.mrf.mxu0
        %v740 = vadd.f32 %v673, %v739
        %741 = vmatmul.bf16.gmra.mxu0 %v716
        %v742 = vpop.f32.mrf.mxu0
        %v743 = vadd.f32 %v678, %v742
        %v744 = vpop.f32.mrf.mxu0
        %v745 = vadd.f32 %v683, %v744
        %746 = vdwg.mxu0
        %v747 = vadd.f32 %v317, %v728
        %v748 = vadd.f32 %v318, %v730
        %v749 = vadd.f32 %v319, %v733
        %v750 = vadd.f32 %v320, %v735
        %v752 = vperm.slane %v312, 0
        %v754 = vmul.f32 %v747, %v752
        %v755 = vmul.f32 %v748, %v752
        %v756 = vmul.f32 %v749, %v752
        %v757 = vmul.f32 %v750, %v752
        %v758 = vpack.c.bf16 %v754, %v754
        %v759 = vpack.c.bf16 %v755, %v755
        %v760 = vpack.c.bf16 %v756, %v756
        %v761 = vpack.c.bf16 %v757, %v757
        %762 = vst.msk [vmem:[#allocation2 + $0x4] sm:$0xf] %vm322, %v758
        %763 = vst.msk [vmem:[#allocation2 + $0x10] sm:$0xf] %vm322, %v759
        %764 = vst.msk [vmem:[#allocation2 + $0x1c] sm:$0xf] %vm322, %v760
        %765 = vst.msk [vmem:[#allocation2 + $0x28] sm:$0xf] %vm322, %v761
        %v766 = vld [vmem:[#allocation2] sm:$0xff]
        %v767 = vld [vmem:[#allocation2 + $0xc] sm:$0xff]
        %v768 = vld [vmem:[#allocation2 + $0x18] sm:$0xff]
        %v769 = vld [vmem:[#allocation2 + $0x24] sm:$0xff]
        %v770 = vld [vmem:[#allocation2 + $0x4] sm:$0xf]
        %v771 = vld [vmem:[#allocation2 + $0x10] sm:$0xf]
        %v772 = vld [vmem:[#allocation2 + $0x1c] sm:$0xf]
        %v773 = vld [vmem:[#allocation2 + $0x28] sm:$0xf]
        %v778 = vunpack.c.l.b16 %v766
        %v779 = vunpack.c.h.b16 %v766
        %v780 = vunpack.c.l.b16 %v767
        %v781 = vunpack.c.h.b16 %v767
        %v782 = vunpack.c.l.b16 %v768
        %v783 = vunpack.c.h.b16 %v768
        %v784 = vunpack.c.l.b16 %v769
        %v785 = vunpack.c.h.b16 %v769
        %v786 = vpack.c.b16 %v780, %v778
        %v787 = vpack.c.b16 %v781, %v779
        %v788 = vpack.c.b16 %v784, %v782
        %v789 = vpack.c.b16 %v785, %v783
        %v794 = vunpack.c.l.b16 %v758
        %v795 = vunpack.c.l.b16 %v759
        %v796 = vunpack.c.l.b16 %v760
        %v797 = vunpack.c.l.b16 %v761
        %v798 = vpack.c.b16 %v795, %v794
        %v799 = vpack.c.b16 %v797, %v796
        %800 = vrot.lane.b32.xlu0 %v798, 126
        %v801 = vpop.permute.xlu0 %800
        %802 = vrot.lane.b32.xlu0 %v799, 126
        %v803 = vpop.permute.xlu0 %802
        %v808 = vunpack.c.l.b16 %v770
        %v809 = vunpack.c.l.b16 %v771
        %v810 = vunpack.c.l.b16 %v772
        %v811 = vunpack.c.l.b16 %v773
        %v812 = vpack.c.b16 %v809, %v808
        %v813 = vpack.c.b16 %v811, %v810
        %814 = vrot.lane.b32.xlu0 %v812, 124
        %v815 = vpop.permute.xlu0 %814
        %816 = vrot.lane.b32.xlu0 %v813, 124
        %v817 = vpop.permute.xlu0 %816
        %818 = vrot.lane.b32.xlu0 %v394, 126
        %v819 = vpop.permute.xlu0 %818
        %s820 = scalar_lea.vmem %s3, 32
        %v821 = vld [vmem:[%s820] sm:$0xf]
        %v822 = vld [vmem:[%s820 + $0x4] sm:$0xf]
        %v823 = vld [vmem:[%s820 + $0x8] sm:$0xf]
        %v824 = vld [vmem:[%s820 + $0xc] sm:$0xf]
        %v825 = vld [vmem:[%s820 + $0x10] sm:$0xf]
        %v826 = vld [vmem:[%s820 + $0x14] sm:$0xf]
        %v827 = vld [vmem:[%s820 + $0x18] sm:$0xf]
        %v828 = vld [vmem:[%s820 + $0x1c] sm:$0xf]
        %s829 = scalar_lea.vmem %s4, 64
        %v830 = vld [vmem:[%s829] sm:$0xff]
        %v831 = vld [vmem:[%s829 + $0x8] sm:$0xff]
        %v832 = vld [vmem:[%s829 + $0x10] sm:$0xff]
        %v833 = vld [vmem:[%s829 + $0x18] sm:$0xff]
        %v834 = vld [vmem:[%s829 + $0x20] sm:$0xff]
        %v835 = vld [vmem:[%s829 + $0x28] sm:$0xff]
        %v836 = vld [vmem:[%s829 + $0x30] sm:$0xff]
        %v837 = vld [vmem:[%s829 + $0x38] sm:$0xff]
        %839 = vset.pattern.permute.xlu0 0
        %840 = vperm.xlu0 %839, %v830
        %v841 = vpop.permute.xlu0 %840
        %844 = vset.pattern.permute.xlu0 0
        %845 = vperm.xlu0 %844, %v831
        %v846 = vpop.permute.xlu0 %845
        %849 = vset.pattern.permute.xlu0 0
        %850 = vperm.xlu0 %849, %v832
        %v851 = vpop.permute.xlu0 %850
        %854 = vset.pattern.permute.xlu0 0
        %855 = vperm.xlu0 %854, %v833
        %v856 = vpop.permute.xlu0 %855
        %859 = vset.pattern.permute.xlu0 0
        %860 = vperm.xlu0 %859, %v834
        %v861 = vpop.permute.xlu0 %860
        %864 = vset.pattern.permute.xlu0 0
        %865 = vperm.xlu0 %864, %v835
        %v866 = vpop.permute.xlu0 %865
        %869 = vset.pattern.permute.xlu0 0
        %870 = vperm.xlu0 %869, %v836
        %v871 = vpop.permute.xlu0 %870
        %874 = vset.pattern.permute.xlu0 0
        %875 = vperm.xlu0 %874, %v837
        %v876 = vpop.permute.xlu0 %875
        %v886 = vunpack.c.l.b16 %v821
        %v887 = vunpack.c.l.b16 %v822
        %v888 = vunpack.c.l.b16 %v823
        %v889 = vunpack.c.l.b16 %v824
        %v890 = vunpack.c.l.b16 %v825
        %v891 = vunpack.c.l.b16 %v826
        %v892 = vunpack.c.l.b16 %v827
        %v893 = vunpack.c.l.b16 %v828
        %v894 = vpack.c.b16 %v887, %v886
        %v895 = vpack.c.b16 %v889, %v888
        %v896 = vpack.c.b16 %v891, %v890
        %v897 = vpack.c.b16 %v893, %v892
        %898 = vrot.lane.b32.xlu0 %v786, 2
        %v899 = vpop.permute.xlu0 %898
        %900 = vrot.lane.b32.xlu0 %v787, 2
        %v901 = vpop.permute.xlu0 %900
        %902 = vrot.lane.b32.xlu0 %v788, 2
        %v903 = vpop.permute.xlu0 %902
        %904 = vrot.lane.b32.xlu0 %v789, 2
        %v905 = vpop.permute.xlu0 %904
        %906 = vrot.lane.b32.xlu0 %v801, 2
        %v907 = vpop.permute.xlu0 %906
        %908 = vrot.lane.b32.xlu0 %v803, 2
        %v909 = vpop.permute.xlu0 %908
        %910 = vrot.lane.b32.xlu0 %v815, 2
        %v911 = vpop.permute.xlu0 %910
        %912 = vrot.lane.b32.xlu0 %v817, 2
        %v913 = vpop.permute.xlu0 %912
        %914 = vrot.lane.b32.xlu0 %v819, 2
        %v915 = vpop.permute.xlu0 %914
        %vm916 = vcmask 15360
        %v917 = vsel %vm916, %v899, %v901
        %v918 = vsel %vm916, %v903, %v905
        %v927 = vsel %vm501, %v894, 0
        %v930 = vsel %vm501, %v895, 0
        %v933 = vsel %vm501, %v896, 0
        %v936 = vsel %vm501, %v897, 0
        %938 = vmatpush.bf16.msra.mxu0 0
        %939 = vmatpush.bf16.msra.mxu0 %v915
        %940 = vmatpush.bf16.msra.mxu0 %v913
        %941 = vmatpush.bf16.msra.mxu0 %v911
        %942 = vmatpush.bf16.msra.mxu0 %v909
        %943 = vmatpush.bf16.msra.mxu0 %v907
        %944 = vmatpush.bf16.msra.mxu0 %v918
        %945 = vmatpush.bf16.msra.mxu0 %v917
        %946 = vmatmul.bf16.gmra.mxu0 %v927
        %v947 = vpop.f32.mrf.mxu0
        %v948 = vadd.f32 %v841, %v947
        %v949 = vpop.f32.mrf.mxu0
        %v950 = vadd.f32 %v846, %v949
        %951 = vmatmul.bf16.gmra.mxu0 %v930
        %v952 = vpop.f32.mrf.mxu0
        %v953 = vadd.f32 %v851, %v952
        %v954 = vpop.f32.mrf.mxu0
        %v955 = vadd.f32 %v856, %v954
        %956 = vmatmul.bf16.gmra.mxu0 %v933
        %v957 = vpop.f32.mrf.mxu0
        %v958 = vadd.f32 %v861, %v957
        %v959 = vpop.f32.mrf.mxu0
        %v960 = vadd.f32 %v866, %v959
        %961 = vmatmul.bf16.gmra.mxu0 %v936
        %v962 = vpop.f32.mrf.mxu0
        %v963 = vadd.f32 %v871, %v962
        %v964 = vpop.f32.mrf.mxu0
        %v965 = vadd.f32 %v876, %v964
        %966 = vdwg.mxu0
        %v967 = vtanh.pop %v948
        %v968 = vtanh.pop %v950
        %v969 = vtanh.pop %v953
        %v970 = vtanh.pop %v955
        %v971 = vxor.u32 %v958, 2147483648
        %v972 = vxor.u32 %v960, 2147483648
        %v973 = vxor.u32 %v963, 2147483648
        %v974 = vxor.u32 %v965, 2147483648
        %v975 = vmul.f32 %v971, 1.442695
        %v976 = vpow.pop %v975
        %v977 = vmul.f32 %v972, 1.442695
        %v978 = vpow.pop %v977
        %v979 = vmul.f32 %v973, 1.442695
        %v980 = vpow.pop %v979
        %v981 = vmul.f32 %v974, 1.442695
        %v982 = vpow.pop %v981
        %v983 = vadd.f32 %v976, 1.0
        %v984 = vadd.f32 %v978, 1.0
        %v985 = vadd.f32 %v980, 1.0
        %v986 = vadd.f32 %v982, 1.0
        %v987 = vrcp.pop %v983
        %v988 = vmul.f32 %v983, %v987
        %v989 = vsub.f32 1.0, %v988
        %v990 = vmul.f32 %v987, %v989
        %v991 = vadd.f32 %v987, %v990
        %vm992 = vweird.f32 %v983
        %vm993 = vweird.f32 %v987
        %vm994 = vmor %vm992, %vm993
        %v995 = vsel %vm994, %v987, %v991
        %v996 = vand.u32 2147483647, %v983
        %vm997 = vcmp.eq.f32.partialorder %v996, 8.507059e+37
        %v998 = vand.u32 %v983, 2147483648
        %v999 = vor.u32 1.1754944e-38, %v998
        %v1000 = vsel %vm997, %v999, %v995
        %v1001 = vmul.f32 1.0, %v1000
        %v1002 = vrcp.pop %v984
        %v1003 = vmul.f32 %v984, %v1002
        %v1004 = vsub.f32 1.0, %v1003
        %v1005 = vmul.f32 %v1002, %v1004
        %v1006 = vadd.f32 %v1002, %v1005
        %vm1007 = vweird.f32 %v984
        %vm1008 = vweird.f32 %v1002
        %vm1009 = vmor %vm1007, %vm1008
        %v1010 = vsel %vm1009, %v1002, %v1006
        %v1011 = vand.u32 2147483647, %v984
        %vm1012 = vcmp.eq.f32.partialorder %v1011, 8.507059e+37
        %v1013 = vand.u32 %v984, 2147483648
        %v1014 = vor.u32 1.1754944e-38, %v1013
        %v1015 = vsel %vm1012, %v1014, %v1010
        %v1016 = vmul.f32 1.0, %v1015
        %v1017 = vrcp.pop %v985
        %v1018 = vmul.f32 %v985, %v1017
        %v1019 = vsub.f32 1.0, %v1018
        %v1020 = vmul.f32 %v1017, %v1019
        %v1021 = vadd.f32 %v1017, %v1020
        %vm1022 = vweird.f32 %v985
        %vm1023 = vweird.f32 %v1017
        %vm1024 = vmor %vm1022, %vm1023
        %v1025 = vsel %vm1024, %v1017, %v1021
        %v1026 = vand.u32 2147483647, %v985
        %vm1027 = vcmp.eq.f32.partialorder %v1026, 8.507059e+37
        %v1028 = vand.u32 %v985, 2147483648
        %v1029 = vor.u32 1.1754944e-38, %v1028
        %v1030 = vsel %vm1027, %v1029, %v1025
        %v1031 = vmul.f32 1.0, %v1030
        %v1032 = vrcp.pop %v986
        %v1033 = vmul.f32 %v986, %v1032
        %v1034 = vsub.f32 1.0, %v1033
        %v1035 = vmul.f32 %v1032, %v1034
        %v1036 = vadd.f32 %v1032, %v1035
        %vm1037 = vweird.f32 %v986
        %vm1038 = vweird.f32 %v1032
        %vm1039 = vmor %vm1037, %vm1038
        %v1040 = vsel %vm1039, %v1032, %v1036
        %v1041 = vand.u32 2147483647, %v986
        %vm1042 = vcmp.eq.f32.partialorder %v1041, 8.507059e+37
        %v1043 = vand.u32 %v986, 2147483648
        %v1044 = vor.u32 1.1754944e-38, %v1043
        %v1045 = vsel %vm1042, %v1044, %v1040
        %v1046 = vmul.f32 1.0, %v1045
        %v1047 = vmul.f32 %v967, %v1001
        %v1048 = vmul.f32 %v968, %v1016
        %v1049 = vmul.f32 %v969, %v1031
        %v1050 = vmul.f32 %v970, %v1046
        %v1051 = vpack.c.bf16 %v1048, %v1047
        %v1052 = vpack.c.bf16 %v1050, %v1049
        %s1053 = scalar_lea.vmem %s5, 32
        %v1054 = vld [vmem:[%s1053] sm:$0xf]
        %v1055 = vld [vmem:[%s1053 + $0x4] sm:$0xf]
        %v1056 = vld [vmem:[%s1053 + $0x8] sm:$0xf]
        %v1057 = vld [vmem:[%s1053 + $0xc] sm:$0xf]
        %v1058 = vld [vmem:[%s1053 + $0x10] sm:$0xf]
        %v1059 = vld [vmem:[%s1053 + $0x14] sm:$0xf]
        %v1060 = vld [vmem:[%s1053 + $0x18] sm:$0xf]
        %v1061 = vld [vmem:[%s1053 + $0x1c] sm:$0xf]
        %s1062 = scalar_lea.vmem %s6, 64
        %v1063 = vld [vmem:[%s1062] sm:$0xff]
        %v1064 = vld [vmem:[%s1062 + $0x8] sm:$0xff]
        %v1065 = vld [vmem:[%s1062 + $0x10] sm:$0xff]
        %v1066 = vld [vmem:[%s1062 + $0x18] sm:$0xff]
        %v1067 = vld [vmem:[%s1062 + $0x20] sm:$0xff]
        %v1068 = vld [vmem:[%s1062 + $0x28] sm:$0xff]
        %v1069 = vld [vmem:[%s1062 + $0x30] sm:$0xff]
        %v1070 = vld [vmem:[%s1062 + $0x38] sm:$0xff]
        %1072 = vset.pattern.permute.xlu0 0
        %1073 = vperm.xlu0 %1072, %v1063
        %v1074 = vpop.permute.xlu0 %1073
        %1077 = vset.pattern.permute.xlu0 0
        %1078 = vperm.xlu0 %1077, %v1064
        %v1079 = vpop.permute.xlu0 %1078
        %1082 = vset.pattern.permute.xlu0 0
        %1083 = vperm.xlu0 %1082, %v1065
        %v1084 = vpop.permute.xlu0 %1083
        %1087 = vset.pattern.permute.xlu0 0
        %1088 = vperm.xlu0 %1087, %v1066
        %v1089 = vpop.permute.xlu0 %1088
        %1092 = vset.pattern.permute.xlu0 0
        %1093 = vperm.xlu0 %1092, %v1067
        %v1094 = vpop.permute.xlu0 %1093
        %1097 = vset.pattern.permute.xlu0 0
        %1098 = vperm.xlu0 %1097, %v1068
        %v1099 = vpop.permute.xlu0 %1098
        %1102 = vset.pattern.permute.xlu0 0
        %1103 = vperm.xlu0 %1102, %v1069
        %v1104 = vpop.permute.xlu0 %1103
        %1107 = vset.pattern.permute.xlu0 0
        %1108 = vperm.xlu0 %1107, %v1070
        %v1109 = vpop.permute.xlu0 %1108
        %v1119 = vunpack.c.l.b16 %v1054
        %v1120 = vunpack.c.l.b16 %v1055
        %v1121 = vunpack.c.l.b16 %v1056
        %v1122 = vunpack.c.l.b16 %v1057
        %v1123 = vunpack.c.l.b16 %v1058
        %v1124 = vunpack.c.l.b16 %v1059
        %v1125 = vunpack.c.l.b16 %v1060
        %v1126 = vunpack.c.l.b16 %v1061
        %v1127 = vpack.c.b16 %v1120, %v1119
        %v1128 = vpack.c.b16 %v1122, %v1121
        %v1129 = vpack.c.b16 %v1124, %v1123
        %v1130 = vpack.c.b16 %v1126, %v1125
        %v1132 = vsel %vm705, %v1127, 0
        %v1135 = vsel %vm705, %v1128, 0
        %v1138 = vsel %vm705, %v1129, 0
        %v1141 = vsel %vm705, %v1130, 0
        %1143 = vmatpush.bf16.msra.mxu0 0
        %1144 = vmatpush.bf16.msra.mxu0 0
        %1145 = vmatpush.bf16.msra.mxu0 0
        %1146 = vmatpush.bf16.msra.mxu0 0
        %1147 = vmatpush.bf16.msra.mxu0 0
        %1148 = vmatpush.bf16.msra.mxu0 0
        %1149 = vmatpush.bf16.msra.mxu0 %v1052
        %1150 = vmatpush.bf16.msra.mxu0 %v1051
        %1151 = vmatmul.bf16.gmra.mxu0 %v1132
        %v1152 = vpop.f32.mrf.mxu0
        %v1153 = vadd.f32 %v1074, %v1152
        %v1154 = vpop.f32.mrf.mxu0
        %v1155 = vadd.f32 %v1079, %v1154
        %1156 = vmatmul.bf16.gmra.mxu0 %v1135
        %v1157 = vpop.f32.mrf.mxu0
        %v1158 = vadd.f32 %v1084, %v1157
        %v1159 = vpop.f32.mrf.mxu0
        %v1160 = vadd.f32 %v1089, %v1159
        %1161 = vmatmul.bf16.gmra.mxu0 %v1138
        %v1162 = vpop.f32.mrf.mxu0
        %v1163 = vadd.f32 %v1094, %v1162
        %v1164 = vpop.f32.mrf.mxu0
        %v1165 = vadd.f32 %v1099, %v1164
        %1166 = vmatmul.bf16.gmra.mxu0 %v1141
        %v1167 = vpop.f32.mrf.mxu0
        %v1168 = vadd.f32 %v1104, %v1167
        %v1169 = vpop.f32.mrf.mxu0
        %v1170 = vadd.f32 %v1109, %v1169
        %1171 = vdwg.mxu0
        %v1172 = vadd.f32 %v754, %v1153
        %v1173 = vadd.f32 %v755, %v1155
        %v1174 = vadd.f32 %v756, %v1158
        %v1175 = vadd.f32 %v757, %v1160
        %v1176 = vmul.f32 %v1172, %v752
        %v1177 = vmul.f32 %v1173, %v752
        %v1178 = vmul.f32 %v1174, %v752
        %v1179 = vmul.f32 %v1175, %v752
        %v1180 = vadd.f32 %v738, %v1163
        %v1181 = vadd.f32 %v740, %v1165
        %v1182 = vadd.f32 %v743, %v1168
        %v1183 = vadd.f32 %v745, %v1170
        %v1184 = vpack.c.bf16 %v1176, %v1176
        %v1185 = vpack.c.bf16 %v1177, %v1177
        %v1186 = vpack.c.bf16 %v1178, %v1178
        %v1187 = vpack.c.bf16 %v1179, %v1179
        %1188 = vst.msk [vmem:[#allocation2 + $0x4] sm:$0xf] %vm322, %v1184
        %1189 = vst.msk [vmem:[#allocation2 + $0x10] sm:$0xf] %vm322, %v1185
        %1190 = vst.msk [vmem:[#allocation2 + $0x1c] sm:$0xf] %vm322, %v1186
        %1191 = vst.msk [vmem:[#allocation2 + $0x28] sm:$0xf] %vm322, %v1187
        %v1192 = vld [vmem:[#allocation2] sm:$0xff]
        %v1193 = vld [vmem:[#allocation2 + $0xc] sm:$0xff]
        %v1194 = vld [vmem:[#allocation2 + $0x18] sm:$0xff]
        %v1195 = vld [vmem:[#allocation2 + $0x24] sm:$0xff]
        %v1196 = vld [vmem:[#allocation2 + $0x4] sm:$0xf]
        %v1197 = vld [vmem:[#allocation2 + $0x10] sm:$0xf]
        %v1198 = vld [vmem:[#allocation2 + $0x1c] sm:$0xf]
        %v1199 = vld [vmem:[#allocation2 + $0x28] sm:$0xf]
        %v1204 = vunpack.c.l.b16 %v1192
        %v1205 = vunpack.c.h.b16 %v1192
        %v1206 = vunpack.c.l.b16 %v1193
        %v1207 = vunpack.c.h.b16 %v1193
        %v1208 = vunpack.c.l.b16 %v1194
        %v1209 = vunpack.c.h.b16 %v1194
        %v1210 = vunpack.c.l.b16 %v1195
        %v1211 = vunpack.c.h.b16 %v1195
        %v1212 = vpack.c.b16 %v1206, %v1204
        %v1213 = vpack.c.b16 %v1207, %v1205
        %v1214 = vpack.c.b16 %v1210, %v1208
        %v1215 = vpack.c.b16 %v1211, %v1209
        %v1220 = vunpack.c.l.b16 %v1184
        %v1221 = vunpack.c.l.b16 %v1185
        %v1222 = vunpack.c.l.b16 %v1186
        %v1223 = vunpack.c.l.b16 %v1187
        %v1224 = vpack.c.b16 %v1221, %v1220
        %v1225 = vpack.c.b16 %v1223, %v1222
        %1226 = vrot.lane.b32.xlu0 %v1224, 124
        %v1227 = vpop.permute.xlu0 %1226
        %1228 = vrot.lane.b32.xlu0 %v1225, 124
        %v1229 = vpop.permute.xlu0 %1228
        %v1234 = vunpack.c.l.b16 %v1196
        %v1235 = vunpack.c.l.b16 %v1197
        %v1236 = vunpack.c.l.b16 %v1198
        %v1237 = vunpack.c.l.b16 %v1199
        %v1238 = vpack.c.b16 %v1235, %v1234
        %v1239 = vpack.c.b16 %v1237, %v1236
        %1240 = vrot.lane.b32.xlu0 %v1238, 120
        %v1241 = vpop.permute.xlu0 %1240
        %1242 = vrot.lane.b32.xlu0 %v1239, 120
        %v1243 = vpop.permute.xlu0 %1242
        %1244 = vrot.lane.b32.xlu0 %v394, 124
        %v1245 = vpop.permute.xlu0 %1244
        %s1246 = scalar_lea.vmem %s3, 64
        %v1247 = vld [vmem:[%s1246] sm:$0xf]
        %v1248 = vld [vmem:[%s1246 + $0x4] sm:$0xf]
        %v1249 = vld [vmem:[%s1246 + $0x8] sm:$0xf]
        %v1250 = vld [vmem:[%s1246 + $0xc] sm:$0xf]
        %v1251 = vld [vmem:[%s1246 + $0x10] sm:$0xf]
        %v1252 = vld [vmem:[%s1246 + $0x14] sm:$0xf]
        %v1253 = vld [vmem:[%s1246 + $0x18] sm:$0xf]
        %v1254 = vld [vmem:[%s1246 + $0x1c] sm:$0xf]
        %s1255 = scalar_lea.vmem %s4, 128
        %v1256 = vld [vmem:[%s1255] sm:$0xff]
        %v1257 = vld [vmem:[%s1255 + $0x8] sm:$0xff]
        %v1258 = vld [vmem:[%s1255 + $0x10] sm:$0xff]
        %v1259 = vld [vmem:[%s1255 + $0x18] sm:$0xff]
        %v1260 = vld [vmem:[%s1255 + $0x20] sm:$0xff]
        %v1261 = vld [vmem:[%s1255 + $0x28] sm:$0xff]
        %v1262 = vld [vmem:[%s1255 + $0x30] sm:$0xff]
        %v1263 = vld [vmem:[%s1255 + $0x38] sm:$0xff]
        %1265 = vset.pattern.permute.xlu0 0
        %1266 = vperm.xlu0 %1265, %v1256
        %v1267 = vpop.permute.xlu0 %1266
        %1270 = vset.pattern.permute.xlu0 0
        %1271 = vperm.xlu0 %1270, %v1257
        %v1272 = vpop.permute.xlu0 %1271
        %1275 = vset.pattern.permute.xlu0 0
        %1276 = vperm.xlu0 %1275, %v1258
        %v1277 = vpop.permute.xlu0 %1276
        %1280 = vset.pattern.permute.xlu0 0
        %1281 = vperm.xlu0 %1280, %v1259
        %v1282 = vpop.permute.xlu0 %1281
        %1285 = vset.pattern.permute.xlu0 0
        %1286 = vperm.xlu0 %1285, %v1260
        %v1287 = vpop.permute.xlu0 %1286
        %1290 = vset.pattern.permute.xlu0 0
        %1291 = vperm.xlu0 %1290, %v1261
        %v1292 = vpop.permute.xlu0 %1291
        %1295 = vset.pattern.permute.xlu0 0
        %1296 = vperm.xlu0 %1295, %v1262
        %v1297 = vpop.permute.xlu0 %1296
        %1300 = vset.pattern.permute.xlu0 0
        %1301 = vperm.xlu0 %1300, %v1263
        %v1302 = vpop.permute.xlu0 %1301
        %v1312 = vunpack.c.l.b16 %v1247
        %v1313 = vunpack.c.l.b16 %v1248
        %v1314 = vunpack.c.l.b16 %v1249
        %v1315 = vunpack.c.l.b16 %v1250
        %v1316 = vunpack.c.l.b16 %v1251
        %v1317 = vunpack.c.l.b16 %v1252
        %v1318 = vunpack.c.l.b16 %v1253
        %v1319 = vunpack.c.l.b16 %v1254
        %v1320 = vpack.c.b16 %v1313, %v1312
        %v1321 = vpack.c.b16 %v1315, %v1314
        %v1322 = vpack.c.b16 %v1317, %v1316
        %v1323 = vpack.c.b16 %v1319, %v1318
        %1324 = vrot.lane.b32.xlu0 %v1212, 4
        %v1325 = vpop.permute.xlu0 %1324
        %1326 = vrot.lane.b32.xlu0 %v1213, 4
        %v1327 = vpop.permute.xlu0 %1326
        %1328 = vrot.lane.b32.xlu0 %v1214, 4
        %v1329 = vpop.permute.xlu0 %1328
        %1330 = vrot.lane.b32.xlu0 %v1215, 4
        %v1331 = vpop.permute.xlu0 %1330
        %1332 = vrot.lane.b32.xlu0 %v1227, 4
        %v1333 = vpop.permute.xlu0 %1332
        %1334 = vrot.lane.b32.xlu0 %v1229, 4
        %v1335 = vpop.permute.xlu0 %1334
        %1336 = vrot.lane.b32.xlu0 %v1241, 4
        %v1337 = vpop.permute.xlu0 %1336
        %1338 = vrot.lane.b32.xlu0 %v1243, 4
        %v1339 = vpop.permute.xlu0 %1338
        %1340 = vrot.lane.b32.xlu0 %v1245, 4
        %v1341 = vpop.permute.xlu0 %1340
        %vm1342 = vcmask 31744
        %v1343 = vsel %vm1342, %v1325, %v1327
        %v1344 = vsel %vm1342, %v1329, %v1331
        %v1353 = vsel %vm501, %v1320, 0
        %v1356 = vsel %vm501, %v1321, 0
        %v1359 = vsel %vm501, %v1322, 0
        %v1362 = vsel %vm501, %v1323, 0
        %1364 = vmatpush.bf16.msra.mxu0 0
        %1365 = vmatpush.bf16.msra.mxu0 %v1341
        %1366 = vmatpush.bf16.msra.mxu0 %v1339
        %1367 = vmatpush.bf16.msra.mxu0 %v1337
        %1368 = vmatpush.bf16.msra.mxu0 %v1335
        %1369 = vmatpush.bf16.msra.mxu0 %v1333
        %1370 = vmatpush.bf16.msra.mxu0 %v1344
        %1371 = vmatpush.bf16.msra.mxu0 %v1343
        %1372 = vmatmul.bf16.gmra.mxu0 %v1353
        %v1373 = vpop.f32.mrf.mxu0
        %v1374 = vadd.f32 %v1267, %v1373
        %v1375 = vpop.f32.mrf.mxu0
        %v1376 = vadd.f32 %v1272, %v1375
        %1377 = vmatmul.bf16.gmra.mxu0 %v1356
        %v1378 = vpop.f32.mrf.mxu0
        %v1379 = vadd.f32 %v1277, %v1378
        %v1380 = vpop.f32.mrf.mxu0
        %v1381 = vadd.f32 %v1282, %v1380
        %1382 = vmatmul.bf16.gmra.mxu0 %v1359
        %v1383 = vpop.f32.mrf.mxu0
        %v1384 = vadd.f32 %v1287, %v1383
        %v1385 = vpop.f32.mrf.mxu0
        %v1386 = vadd.f32 %v1292, %v1385
        %1387 = vmatmul.bf16.gmra.mxu0 %v1362
        %v1388 = vpop.f32.mrf.mxu0
        %v1389 = vadd.f32 %v1297, %v1388
        %v1390 = vpop.f32.mrf.mxu0
        %v1391 = vadd.f32 %v1302, %v1390
        %1392 = vdwg.mxu0
        %v1393 = vtanh.pop %v1374
        %v1394 = vtanh.pop %v1376
        %v1395 = vtanh.pop %v1379
        %v1396 = vtanh.pop %v1381
        %v1397 = vxor.u32 %v1384, 2147483648
        %v1398 = vxor.u32 %v1386, 2147483648
        %v1399 = vxor.u32 %v1389, 2147483648
        %v1400 = vxor.u32 %v1391, 2147483648
        %v1401 = vmul.f32 %v1397, 1.442695
        %v1402 = vpow.pop %v1401
        %v1403 = vmul.f32 %v1398, 1.442695
        %v1404 = vpow.pop %v1403
        %v1405 = vmul.f32 %v1399, 1.442695
        %v1406 = vpow.pop %v1405
        %v1407 = vmul.f32 %v1400, 1.442695
        %v1408 = vpow.pop %v1407
        %v1409 = vadd.f32 %v1402, 1.0
        %v1410 = vadd.f32 %v1404, 1.0
        %v1411 = vadd.f32 %v1406, 1.0
        %v1412 = vadd.f32 %v1408, 1.0
        %v1413 = vrcp.pop %v1409
        %v1414 = vmul.f32 %v1409, %v1413
        %v1415 = vsub.f32 1.0, %v1414
        %v1416 = vmul.f32 %v1413, %v1415
        %v1417 = vadd.f32 %v1413, %v1416
        %vm1418 = vweird.f32 %v1409
        %vm1419 = vweird.f32 %v1413
        %vm1420 = vmor %vm1418, %vm1419
        %v1421 = vsel %vm1420, %v1413, %v1417
        %v1422 = vand.u32 2147483647, %v1409
        %vm1423 = vcmp.eq.f32.partialorder %v1422, 8.507059e+37
        %v1424 = vand.u32 %v1409, 2147483648
        %v1425 = vor.u32 1.1754944e-38, %v1424
        %v1426 = vsel %vm1423, %v1425, %v1421
        %v1427 = vmul.f32 1.0, %v1426
        %v1428 = vrcp.pop %v1410
        %v1429 = vmul.f32 %v1410, %v1428
        %v1430 = vsub.f32 1.0, %v1429
        %v1431 = vmul.f32 %v1428, %v1430
        %v1432 = vadd.f32 %v1428, %v1431
        %vm1433 = vweird.f32 %v1410
        %vm1434 = vweird.f32 %v1428
        %vm1435 = vmor %vm1433, %vm1434
        %v1436 = vsel %vm1435, %v1428, %v1432
        %v1437 = vand.u32 2147483647, %v1410
        %vm1438 = vcmp.eq.f32.partialorder %v1437, 8.507059e+37
        %v1439 = vand.u32 %v1410, 2147483648
        %v1440 = vor.u32 1.1754944e-38, %v1439
        %v1441 = vsel %vm1438, %v1440, %v1436
        %v1442 = vmul.f32 1.0, %v1441
        %v1443 = vrcp.pop %v1411
        %v1444 = vmul.f32 %v1411, %v1443
        %v1445 = vsub.f32 1.0, %v1444
        %v1446 = vmul.f32 %v1443, %v1445
        %v1447 = vadd.f32 %v1443, %v1446
        %vm1448 = vweird.f32 %v1411
        %vm1449 = vweird.f32 %v1443
        %vm1450 = vmor %vm1448, %vm1449
        %v1451 = vsel %vm1450, %v1443, %v1447
        %v1452 = vand.u32 2147483647, %v1411
        %vm1453 = vcmp.eq.f32.partialorder %v1452, 8.507059e+37
        %v1454 = vand.u32 %v1411, 2147483648
        %v1455 = vor.u32 1.1754944e-38, %v1454
        %v1456 = vsel %vm1453, %v1455, %v1451
        %v1457 = vmul.f32 1.0, %v1456
        %v1458 = vrcp.pop %v1412
        %v1459 = vmul.f32 %v1412, %v1458
        %v1460 = vsub.f32 1.0, %v1459
        %v1461 = vmul.f32 %v1458, %v1460
        %v1462 = vadd.f32 %v1458, %v1461
        %vm1463 = vweird.f32 %v1412
        %vm1464 = vweird.f32 %v1458
        %vm1465 = vmor %vm1463, %vm1464
        %v1466 = vsel %vm1465, %v1458, %v1462
        %v1467 = vand.u32 2147483647, %v1412
        %vm1468 = vcmp.eq.f32.partialorder %v1467, 8.507059e+37
        %v1469 = vand.u32 %v1412, 2147483648
        %v1470 = vor.u32 1.1754944e-38, %v1469
        %v1471 = vsel %vm1468, %v1470, %v1466
        %v1472 = vmul.f32 1.0, %v1471
        %v1473 = vmul.f32 %v1393, %v1427
        %v1474 = vmul.f32 %v1394, %v1442
        %v1475 = vmul.f32 %v1395, %v1457
        %v1476 = vmul.f32 %v1396, %v1472
        %v1477 = vpack.c.bf16 %v1474, %v1473
        %v1478 = vpack.c.bf16 %v1476, %v1475
        %s1479 = scalar_lea.vmem %s5, 64
        %v1480 = vld [vmem:[%s1479 + $0x10] sm:$0xf]
        %v1481 = vld [vmem:[%s1479 + $0x14] sm:$0xf]
        %v1482 = vld [vmem:[%s1479 + $0x18] sm:$0xf]
        %v1483 = vld [vmem:[%s1479 + $0x1c] sm:$0xf]
        %s1484 = scalar_lea.vmem %s6, 128
        %v1485 = vld [vmem:[%s1484 + $0x20] sm:$0xff]
        %v1486 = vld [vmem:[%s1484 + $0x28] sm:$0xff]
        %v1487 = vld [vmem:[%s1484 + $0x30] sm:$0xff]
        %v1488 = vld [vmem:[%s1484 + $0x38] sm:$0xff]
        %1490 = vset.pattern.permute.xlu0 0
        %1491 = vperm.xlu0 %1490, %v1485
        %v1492 = vpop.permute.xlu0 %1491
        %1495 = vset.pattern.permute.xlu0 0
        %1496 = vperm.xlu0 %1495, %v1486
        %v1497 = vpop.permute.xlu0 %1496
        %1500 = vset.pattern.permute.xlu0 0
        %1501 = vperm.xlu0 %1500, %v1487
        %v1502 = vpop.permute.xlu0 %1501
        %1505 = vset.pattern.permute.xlu0 0
        %1506 = vperm.xlu0 %1505, %v1488
        %v1507 = vpop.permute.xlu0 %1506
        %v1513 = vunpack.c.l.b16 %v1480
        %v1514 = vunpack.c.l.b16 %v1481
        %v1515 = vunpack.c.l.b16 %v1482
        %v1516 = vunpack.c.l.b16 %v1483
        %v1517 = vpack.c.b16 %v1514, %v1513
        %v1518 = vpack.c.b16 %v1516, %v1515
        %v1520 = vsel %vm705, %v1517, 0
        %v1523 = vsel %vm705, %v1518, 0
        %1525 = vmatpush.bf16.msra.mxu0 0
        %1526 = vmatpush.bf16.msra.mxu0 0
        %1527 = vmatpush.bf16.msra.mxu0 0
        %1528 = vmatpush.bf16.msra.mxu0 0
        %1529 = vmatpush.bf16.msra.mxu0 0
        %1530 = vmatpush.bf16.msra.mxu0 0
        %1531 = vmatpush.bf16.msra.mxu0 %v1478
        %1532 = vmatpush.bf16.msra.mxu0 %v1477
        %1533 = vmatmul.bf16.gmra.mxu0 %v1520
        %v1534 = vpop.f32.mrf.mxu0
        %v1535 = vadd.f32 %v1492, %v1534
        %v1536 = vpop.f32.mrf.mxu0
        %v1537 = vadd.f32 %v1497, %v1536
        %1538 = vmatmul.bf16.gmra.mxu0 %v1523
        %v1539 = vpop.f32.mrf.mxu0
        %v1540 = vadd.f32 %v1502, %v1539
        %v1541 = vpop.f32.mrf.mxu0
        %v1542 = vadd.f32 %v1507, %v1541
        %1543 = vdwg.mxu0
        %v1544 = vadd.f32 %v1180, %v1535
        %v1545 = vadd.f32 %v1181, %v1537
        %v1546 = vadd.f32 %v1182, %v1540
        %v1547 = vadd.f32 %v1183, %v1542
        %v1548 = vmul.f32 %v1544, %v752
        %v1549 = vmul.f32 %v1545, %v752
        %v1550 = vmul.f32 %v1546, %v752
        %v1551 = vmul.f32 %v1547, %v752
        %vm1552 = vcmask 523264
        %1553 = vst.msk [vmem:[%s297] sm:$0xff] %vm1552, %v1548
        %1554 = vst.msk [vmem:[%s297 + $0x8] sm:$0xff] %vm1552, %v1549
        %1555 = vst.msk [vmem:[%s297 + $0x10] sm:$0xff] %vm1552, %v1550
        %1556 = vst.msk [vmem:[%s297 + $0x18] sm:$0xff] %vm1552, %v1551
        %s1557 = sand.u32 %s191, 1
        %s1558 = scalar_lea.sflag [#allocation4], %s1557
        %s1559 = sand.u32 %s191, 1
        %s1560 = smul.addr %s1559, 32
        %s1561 = scalar_lea.vmem [#allocation3], %s1560
        // Predicated region
        $region49: #{tpu_custom_call.1} parent=47 // pred_check
          %p1562 = pneg %p201
        $region50: #{tpu_custom_call.1} parent=47 // pred_check_branch
          %1564 = sbr.rel (%p1562) target = $region52
        $region51: #{tpu_custom_call.1} parent=47 // pred_region
          %1566 = vsyncadd %s1558, 0
          %s1567 = smul.addr %s21, 4
          %s1568 = smul.addr %s1567, 8
          %s1569 = scalar_lea.hbm %s7, %s1568
          %s1570 = sshll.u32 %s1561, 4
          %s1571 = int_to_ptr.vmem [resolvable:$true] %s1570
          %s1572 = sshll.u32 %s1569, 4
          %s1573 = int_to_ptr.hbm [resolvable:$true] %s1572
          %1578 = dma.vmem_to_hbm [thread:$0]  %s1571, 512, %s1573, %s1558, 128, 128, 8
        $region52: #{tpu_custom_call.1} parent=47 // pred_fallthru
          _
      $region48: #{tpu_custom_call.1} parent=5 // pred_fallthru
        _
      %p1579 = scmp.le.s32.totalorder 2, %s16
      // Predicated region
      $region53: #{tpu_custom_call.1} parent=5 // pred_check
        %p1580 = pneg %p1579
      $region54: #{tpu_custom_call.1} parent=5 // pred_check_branch
        %1582 = sbr.rel (%p1580) target = $region56
      $region55: #{tpu_custom_call.1} parent=5 // pred_region
        %s1583 = ssub.s32 %s16, 2
        // Predicated region
        $region57: #{tpu_custom_call.1} parent=55 // pred_check
          %p1584 = pneg %p207
        $region58: #{tpu_custom_call.1} parent=55 // pred_check_branch
          %1586 = sbr.rel (%p1584) target = $region60
        $region59: #{tpu_custom_call.1} parent=55 // pred_region
          %s1587 = sand.u32 %s192, 1
          %s1588 = scalar_lea.sflag [#allocation4], %s1587
          %s1589 = sand.u32 %s192, 1
          %s1590 = smul.addr %s1589, 32
          %s1591 = scalar_lea.vmem [#allocation3], %s1590
          %1593 = dma.done %s1588, 512
        $region60: #{tpu_custom_call.1} parent=55 // pred_fallthru
          _
      $region56: #{tpu_custom_call.1} parent=5 // pred_fallthru
        _
    $region6: #{tpu_custom_call.1} parent=1 // loop_footer
      %s20 = sadd.s32 1, %s16
    $region7: #{tpu_custom_call.1} parent=1 // loop_footer_branch
      %15 = sbr.rel target = $region3
    $region8: #{tpu_custom_call.1} parent=1 // loop_exit
      _
    %1594 = vsyncpa [#allocation4], 1
    %s1595 = scalar_lea.sflag [#allocation4], 1
    %1596 = vsyncpa %s1595, 1

</llo_original>
